<compile_context>
chip_gen: v5e
topology: v5e:2x2
jax: 0.10.0
libtpu: 0.0.40
codegen_flags: <defaults>
</compile_context>

<pallas_src>
import functools

import jax
import jax.numpy as jnp
import numpy as np
from jax import lax
from jax.experimental import pallas as pl
from jax.experimental.pallas import tpu as pltpu

BN_EPS = 1e-5
LEAKY_SLOPE = 0.1


def _leaky(v):
    return jnp.where(v > 0, v, LEAKY_SLOPE * v)


def conv_block_kernel(x_ref, top_ref, bot_ref, w1_ref, b1_ref, w3_ref, b2_ref,
                      o_ref, *, W, tile_h, single_matmul):
    # x_ref  : (1, tile_h*W, C) f32   current row tile, spatial flat, C on lanes
    # top_ref: (1, 1, W, C)     f32   image row just above the tile (zeros at border)
    # bot_ref: (1, 1, W, C)     f32   image row just below the tile (zeros at border)
    # w1_ref : (C, Cmid)        bf16  1x1 conv weight with BN1 scale folded in
    # b1_ref : (1, Cmid)        f32   folded BN1 shift
    # w3_ref : (9*Cmid, C)      bf16  3x3 conv weight (taps stacked on K), BN2 scale folded
    # b2_ref : (1, C)           f32   folded BN2 shift
    # o_ref  : (1, tile_h*W, C) f32
    tile_hw = tile_h * W
    Cmid = w1_ref.shape[1]
    C = x_ref.shape[2]
    t = pl.program_id(1)
    n_tiles = pl.num_programs(1)

    # ---- x slab with a 1-row halo on each side (bf16 MXU operand) -----------
    x_slab = jnp.concatenate(
        [top_ref[0, 0].astype(jnp.bfloat16),
         x_ref[0].astype(jnp.bfloat16),
         bot_ref[0, 0].astype(jnp.bfloat16)], axis=0)        # (tile_hw+2W, C)

    # ---- 1x1 conv (BN1 scale folded into w1) + bias + LeakyReLU -------------
    h = jnp.dot(x_slab, w1_ref[...], preferred_element_type=jnp.float32)
    h = _leaky(h + b1_ref[...])                              # (tile_hw+2W, Cmid)

    # The 3x3 "same" zero padding applies to h, not to x (h(x=0) != 0 because
    # of the BN bias), so zero the halo rows that fall outside the image.
    slab_rows = tile_hw + 2 * W
    ridx = lax.broadcasted_iota(jnp.int32, (slab_rows, 1), 0)
    valid = jnp.logical_and(
        jnp.logical_or(t > 0, ridx >= W),
        jnp.logical_or(t < n_tiles - 1, ridx < tile_hw + W))
    h = jnp.where(valid, h, 0.0).astype(jnp.bfloat16)        # bf16 once

    # ---- 3x3 conv (pad=1) via shifted bf16 slices of the haloed slab --------
    zrow = jnp.zeros((1, Cmid), jnp.bfloat16)
    hp = jnp.concatenate([zrow, h, zrow], axis=0)            # (slab_rows+2, Cmid)

    j = lax.broadcasted_iota(jnp.int32, (tile_hw, 1), 0) % W
    not_left = j >= 1            # tap dx=0 needs column j-1
    not_right = j <= W - 2       # tap dx=2 needs column j+1
    zero_bf = jnp.zeros((), jnp.bfloat16)

    def tap(dy, dx):
        v = hp[dy * W + dx:dy * W + dx + tile_hw, :]         # (tile_hw, Cmid) bf16
        if dx == 0:
            v = jnp.where(not_left, v, zero_bf)
        elif dx == 2:
            v = jnp.where(not_right, v, zero_bf)
        return v

    if single_matmul:
        # 128-aligned Cmid: ONE MXU call with K = 9*Cmid (best on v5e/v6e MRF).
        im2col = jnp.concatenate(
            [tap(dy, dx) for dy in range(3) for dx in range(3)], axis=1)
        y = jnp.dot(im2col, w3_ref[...], preferred_element_type=jnp.float32)
    else:
        # Unaligned Cmid: skip the cross-lane concat; accumulate 9 K=Cmid
        # matmuls in f32 (preferred on v7x's in-place MRB accumulation).
        y = jnp.zeros((tile_hw, C), jnp.float32)
        k = 0
        for dy in range(3):
            for dx in range(3):
                y = y + jnp.dot(tap(dy, dx),
                                w3_ref[k * Cmid:(k + 1) * Cmid, :],
                                preferred_element_type=jnp.float32)
                k += 1

    y = _leaky(y + b2_ref[...])                              # (tile_hw, C) f32

    # ---- residual: re-read the x tile right before the store ----------------
    o_ref[0] = y + x_ref[0]


def _vmem_estimate(tile_hw, W, C):
    """Rough per-grid-step VMEM working set in bytes."""
    Cmid = C // 2
    slab = tile_hw + 2 * W
    b = 2 * 2 * tile_hw * C * 4            # x + out tiles, double-buffered f32
    b += 2 * 2 * 2 * W * C * 4             # halo rows, double-buffered f32
    b += (C * Cmid + 9 * Cmid * C) * 2     # weights, bf16, single-buffered
    b += (Cmid + C) * 4                    # biases
    b += slab * C * 2                      # bf16 x slab copy
    b += slab * Cmid * (4 + 2)             # h in f32 + bf16
    b += (slab + 2) * Cmid * 2             # zero-padded hp
    b += tile_hw * 9 * Cmid * 2            # im2col (single-matmul path)
    b += 2 * tile_hw * C * 4               # y accumulator + epilogue temps
    return b


def _choose_tile_h(H, W, C):
    """Largest row tile whose working set stays within a budget that is safe on
    every generation (v5e/v6e scoped-VMEM default, v7x 64 MiB physical)."""
    budget = 12 * 1024 * 1024
    cands = [d for d in range(1, H + 1)
             if H % d == 0 and (d == H or (d * W) % 8 == 0)]
    fit = [d for d in cands if _vmem_estimate(d * W, W, C) <= budget]
    # TODO(synk): also tile W (with a column halo) for feature maps whose
    # single-row working set still exceeds the budget.
    return max(fit) if fit else min(cands)


def conv_block_yolo(x_nchw, params, *, tile_h=None):
    """ConvBlockYolo(channels, num_repeats=1) forward. x_nchw: (N, C, H, W) f32."""
    (w1, g1, be1, rm1, rv1, w3, g2, be2, rm2, rv2) = params
    N, C, H, W = x_nchw.shape
    assert C % 2 == 0 and W >= 2, "ConvBlockYolo needs even channels and W >= 2"
    Cmid = C // 2

    if tile_h is None:
        tile_h = _choose_tile_h(H, W, C)
    assert H % tile_h == 0, "tile_h must divide H"
    n_tiles = H // tile_h
    tile_hw = tile_h * W
    assert n_tiles == 1 or tile_hw % 8 == 0, "row tile must be sublane aligned"

    # Fold eval-mode BatchNorm into per-channel scale/shift (f32), then fold
    # the scales into the conv weights BEFORE the bf16 cast; only the bias
    # adds remain in-kernel.
    s1 = g1 / jnp.sqrt(rv1 + BN_EPS)
    b1 = be1 - rm1 * s1
    s2 = g2 / jnp.sqrt(rv2 + BN_EPS)
    b2 = be2 - rm2 * s2

    w1_k = (jnp.transpose(w1[:, :, 0, 0], (1, 0)) * s1[None, :]).astype(jnp.bfloat16)
    w3_k = jnp.transpose(w3 * s2[:, None, None, None], (2, 3, 1, 0))
    w3_k = w3_k.reshape(9 * Cmid, C).astype(jnp.bfloat16)
    b1_k = b1.reshape(1, Cmid).astype(jnp.float32)
    b2_k = b2.reshape(1, C).astype(jnp.float32)

    # NCHW -> (N, H*W, C): channels on lanes, flat spatial rows on sublanes.
    # TODO(synk): keep the surrounding network in NHWC (and bf16 activations if
    # acceptable) so this layout change / f32 transport is paid once per model,
    # not once per block.
    x_nhwc = jnp.transpose(x_nchw, (0, 2, 3, 1)).astype(jnp.float32)  # (N,H,W,C)
    x_flat = x_nhwc.reshape(N, H * W, C)

    # Per-tile 1-row halos (zero rows beyond the image border); tiny arrays,
    # so the main x tile is read exactly once per step.
    zrow = jnp.zeros((N, 1, W, C), jnp.float32)
    xp = jnp.concatenate([zrow, x_nhwc, zrow], axis=1)                # (N,H+2,W,C)
    top = xp[:, 0:H:tile_h]                                           # (N,nT,W,C)
    bot = xp[:, tile_h + 1:H + 2:tile_h]                              # (N,nT,W,C)

    single_matmul = (Cmid % 128 == 0) or (Cmid % 8 != 0)
    kernel = functools.partial(conv_block_kernel, W=W, tile_h=tile_h,
                               single_matmul=single_matmul)

    const = dict(pipeline_mode=pl.Buffered(1))   # constant-index operands
    grid_spec = pltpu.PrefetchScalarGridSpec(
        num_scalar_prefetch=0,
        grid=(N, n_tiles),
        in_specs=[
            pl.BlockSpec((1, tile_hw, C), lambda n, t: (n, t, 0)),      # x tile
            pl.BlockSpec((1, 1, W, C), lambda n, t: (n, t, 0, 0)),      # top halo
            pl.BlockSpec((1, 1, W, C), lambda n, t: (n, t, 0, 0)),      # bottom halo
            pl.BlockSpec((C, Cmid), lambda n, t: (0, 0), **const),      # w1 (scaled)
            pl.BlockSpec((1, Cmid), lambda n, t: (0, 0), **const),      # b1
            pl.BlockSpec((9 * Cmid, C), lambda n, t: (0, 0), **const),  # w3 (scaled)
            pl.BlockSpec((1, C), lambda n, t: (0, 0), **const),         # b2
        ],
        out_specs=pl.BlockSpec((1, tile_hw, C), lambda n, t: (n, t, 0)),
    )

    vmem_limit = int(min(max(1.5 * _vmem_estimate(tile_hw, W, C),
                             32 * 1024 * 1024), 64 * 1024 * 1024))

    out_flat = pl.pallas_call(
        kernel,
        out_shape=jax.ShapeDtypeStruct((N, H * W, C), jnp.float32),
        grid_spec=grid_spec,
        compiler_params=pltpu.CompilerParams(
            dimension_semantics=("parallel", "parallel"),
            vmem_limit_bytes=vmem_limit),
    )(x_flat, top, bot, w1_k, b1_k, w3_k, b2_k)

    # (N, H*W, C) -> NCHW
    return jnp.transpose(out_flat.reshape(N, H, W, C), (0, 3, 1, 2))


def reference_forward(x_nchw, params):
    """Plain-JAX f32 reference (lax.conv) for correctness checking."""
    (w1, g1, be1, rm1, rv1, w3, g2, be2, rm2, rv2) = params
    dn = ("NCHW", "OIHW", "NCHW")

    h = lax.conv_general_dilated(x_nchw, w1, (1, 1), "VALID",
                                 dimension_numbers=dn)
    h = (h - rm1[None, :, None, None]) / jnp.sqrt(rv1 + BN_EPS)[None, :, None, None]
    h = h * g1[None, :, None, None] + be1[None, :, None, None]
    h = jnp.where(h > 0, h, LEAKY_SLOPE * h)

    y = lax.conv_general_dilated(h, w3, (1, 1), ((1, 1), (1, 1)),
                                 dimension_numbers=dn)
    y = (y - rm2[None, :, None, None]) / jnp.sqrt(rv2 + BN_EPS)[None, :, None, None]
    y = y * g2[None, :, None, None] + be2[None, :, None, None]
    y = jnp.where(y > 0, y, LEAKY_SLOPE * y)

    return y + x_nchw


def init_params(key, channels):
    """Deterministic synthetic parameters (Conv2d OIHW weights + BN params)."""
    cmid = channels // 2
    ks = jax.random.split(key, 8)
    w1 = jax.random.normal(ks[0], (cmid, channels, 1, 1), jnp.float32)
    w1 = w1 / np.sqrt(channels)
    w3 = jax.random.normal(ks[1], (channels, cmid, 3, 3), jnp.float32)
    w3 = w3 / np.sqrt(9 * cmid)
    g1 = 1.0 + 0.1 * jax.random.normal(ks[2], (cmid,), jnp.float32)
    be1 = 0.1 * jax.random.normal(ks[3], (cmid,), jnp.float32)
    rm1 = 0.1 * jax.random.normal(ks[4], (cmid,), jnp.float32)
    rv1 = jax.random.uniform(ks[5], (cmid,), jnp.float32, 0.5, 1.5)
    g2 = 1.0 + 0.1 * jax.random.normal(ks[6], (channels,), jnp.float32)
    be2 = 0.1 * jax.random.normal(ks[7], (channels,), jnp.float32)
    rm2 = 0.1 * jax.random.normal(jax.random.fold_in(key, 100), (channels,), jnp.float32)
    rv2 = jax.random.uniform(jax.random.fold_in(key, 101), (channels,), jnp.float32, 0.5, 1.5)
    return (w1, g1, be1, rm1, rv1, w3, g2, be2, rm2, rv2)


if __name__ == "__main__":
    key = jax.random.PRNGKey(0)
    N, C, H, W = 2, 64, 16, 16     # channels must be even (channels // 2 branch)
    kx, kp = jax.random.split(key)
    x = jax.random.normal(kx, (N, C, H, W), jnp.float32)
    params = init_params(kp, C)

    ref = jax.block_until_ready(reference_forward(x, params))

    # Row-tiled path (2 tiles of 8 rows -> exercises the halo handling).
    out_tiled = jax.block_until_ready(conv_block_yolo(x, params, tile_h=8))
    # Auto-chosen tile (whole image at this tiny size -> single-tile path).
    out_auto = jax.block_until_ready(conv_block_yolo(x, params))

    # bf16 MXU operands with f32 accumulation -> bf16-level tolerance vs f32 ref.
    np.testing.assert_allclose(np.asarray(out_tiled), np.asarray(ref),
                               rtol=5e-2, atol=5e-2)
    np.testing.assert_allclose(np.asarray(out_auto), np.asarray(ref),
                               rtol=5e-2, atol=5e-2)
    assert out_tiled.shape == (N, C, H, W) and out_tiled.dtype == jnp.float32
    print("KERNEL_OK")
</pallas_src>

<mosaic_0001>
module attributes {stable_mosaic.version = 11 : i64} {
  func.func @conv_block_kernel(%arg0: i32, %arg1: i32, %arg2: memref<1x128x64xf32, #tpu.memory_space<vmem>>, %arg3: memref<1x1x16x64xf32, #tpu.memory_space<vmem>>, %arg4: memref<1x1x16x64xf32, #tpu.memory_space<vmem>>, %arg5: memref<64x32xbf16, #tpu.memory_space<vmem>>, %arg6: memref<1x32xf32, #tpu.memory_space<vmem>>, %arg7: memref<288x64xbf16, #tpu.memory_space<vmem>>, %arg8: memref<1x64xf32, #tpu.memory_space<vmem>>, %arg9: memref<1x128x64xf32, #tpu.memory_space<vmem>>) attributes {dimension_semantics = [#tpu.dimension_semantics<parallel>, #tpu.dimension_semantics<parallel>], iteration_bounds = array<i64: 2, 2>, scalar_prefetch = 0 : i64, scratch_operands = 0 : i64, tpu.core_type = #tpu.core_type<tc>, window_params = [{transform_indices = @transform_0, window_bounds = array<i64: 1, 128, 64>}, {transform_indices = @transform_1, window_bounds = array<i64: 1, 1, 16, 64>}, {transform_indices = @transform_2, window_bounds = array<i64: 1, 1, 16, 64>}, {pipeline_mode = #tpu.pipeline_mode<synchronous>, transform_indices = @transform_3, window_bounds = array<i64: 64, 32>}, {pipeline_mode = #tpu.pipeline_mode<synchronous>, transform_indices = @transform_4, window_bounds = array<i64: 1, 32>}, {pipeline_mode = #tpu.pipeline_mode<synchronous>, transform_indices = @transform_5, window_bounds = array<i64: 288, 64>}, {pipeline_mode = #tpu.pipeline_mode<synchronous>, transform_indices = @transform_6, window_bounds = array<i64: 1, 64>}, {transform_indices = @transform_7, window_bounds = array<i64: 1, 128, 64>}]} {
    %c0 = arith.constant 0 : index
    %c0_0 = arith.constant 0 : index
    %c0_1 = arith.constant 0 : index
    %c0_2 = arith.constant 0 : index
    %0 = vector.load %arg3[%c0, %c0_0, %c0_1, %c0_2] : memref<1x1x16x64xf32, #tpu.memory_space<vmem>>, vector<1x1x16x64xf32>
    %1 = vector.shape_cast %0 : vector<1x1x16x64xf32> to vector<16x64xf32>
    %2 = arith.truncf %1 : vector<16x64xf32> to vector<16x64xbf16>
    %c0_3 = arith.constant 0 : index
    %c0_4 = arith.constant 0 : index
    %c0_5 = arith.constant 0 : index
    %3 = vector.load %arg2[%c0_3, %c0_4, %c0_5] : memref<1x128x64xf32, #tpu.memory_space<vmem>>, vector<1x128x64xf32>
    %4 = vector.shape_cast %3 : vector<1x128x64xf32> to vector<128x64xf32>
    %5 = arith.truncf %4 : vector<128x64xf32> to vector<128x64xbf16>
    %c0_6 = arith.constant 0 : index
    %c0_7 = arith.constant 0 : index
    %c0_8 = arith.constant 0 : index
    %c0_9 = arith.constant 0 : index
    %6 = vector.load %arg4[%c0_6, %c0_7, %c0_8, %c0_9] : memref<1x1x16x64xf32, #tpu.memory_space<vmem>>, vector<1x1x16x64xf32>
    %7 = vector.shape_cast %6 : vector<1x1x16x64xf32> to vector<16x64xf32>
    %8 = arith.truncf %7 : vector<16x64xf32> to vector<16x64xbf16>
    %9 = tpu.concatenate %2, %5, %8 in 0 : vector<16x64xbf16>, vector<128x64xbf16>, vector<16x64xbf16> -> vector<160x64xbf16>
    %c0_10 = arith.constant 0 : index
    %c0_11 = arith.constant 0 : index
    %10 = vector.load %arg5[%c0_10, %c0_11] : memref<64x32xbf16, #tpu.memory_space<vmem>>, vector<64x32xbf16>
    %cst = arith.constant dense<0.000000e+00> : vector<160x32xf32>
    %11 = tpu.matmul %9, %10, %cst {dimension_numbers = #tpu.dot_dimension_numbers<[1], [0], [0], [1], [0, 0, 1, 1], [], []>} : vector<160x64xbf16>, vector<64x32xbf16>, vector<160x32xf32> -> vector<160x32xf32>
    %c0_12 = arith.constant 0 : index
    %c0_13 = arith.constant 0 : index
    %12 = vector.load %arg6[%c0_12, %c0_13] : memref<1x32xf32, #tpu.memory_space<vmem>>, vector<1x32xf32>
    %13 = vector.broadcast %12 : vector<1x32xf32> to vector<160x32xf32>
    %14 = arith.addf %11, %13 : vector<160x32xf32>
    %cst_14 = arith.constant 0.000000e+00 : f32
    %15 = vector.broadcast %cst_14 : f32 to vector<160x32xf32>
    %16 = arith.cmpf ogt, %14, %15 : vector<160x32xf32>
    %cst_15 = arith.constant 1.000000e-01 : f32
    %17 = vector.broadcast %cst_15 : f32 to vector<160x32xf32>
    %18 = arith.mulf %17, %14 : vector<160x32xf32>
    %19 = arith.select %16, %14, %18 : vector<160x32xi1>, vector<160x32xf32>
    %20 = tpu.iota {dimensions = array<i32: 0>} : vector<160x1xi32>
    %c0_i32 = arith.constant 0 : i32
    %21 = arith.cmpi sgt, %arg1, %c0_i32 : i32
    %c16_i32 = arith.constant 16 : i32
    %22 = vector.broadcast %c16_i32 : i32 to vector<160x1xi32>
    %23 = arith.cmpi sge, %20, %22 : vector<160x1xi32>
    %24 = vector.broadcast %21 : i1 to vector<160x1xi1>
    %25 = arith.ori %24, %23 : vector<160x1xi1>
    %c1_i32 = arith.constant 1 : i32
    %26 = arith.cmpi slt, %arg1, %c1_i32 : i32
    %c144_i32 = arith.constant 144 : i32
    %27 = vector.broadcast %c144_i32 : i32 to vector<160x1xi32>
    %28 = arith.cmpi slt, %20, %27 : vector<160x1xi32>
    %29 = vector.broadcast %26 : i1 to vector<160x1xi1>
    %30 = arith.ori %29, %28 : vector<160x1xi1>
    %31 = arith.andi %25, %30 : vector<160x1xi1>
    %cst_16 = arith.constant 0.000000e+00 : f32
    %32 = vector.shape_cast %31 : vector<160x1xi1> to vector<160x1xi1>
    %33 = vector.broadcast %32 : vector<160x1xi1> to vector<160x32xi1>
    %34 = vector.broadcast %cst_16 : f32 to vector<160x32xf32>
    %35 = arith.select %33, %19, %34 : vector<160x32xi1>, vector<160x32xf32>
    %36 = arith.truncf %35 : vector<160x32xf32> to vector<160x32xbf16>
    %cst_17 = arith.constant 0.000000e+00 : bf16
    %37 = vector.broadcast %cst_17 : bf16 to vector<1x32xbf16>
    %38 = tpu.concatenate %37, %36, %37 in 0 : vector<1x32xbf16>, vector<160x32xbf16>, vector<1x32xbf16> -> vector<162x32xbf16>
    %39 = tpu.iota {dimensions = array<i32: 0>} : vector<128x1xi32>
    %c16_i32_18 = arith.constant 16 : i32
    %c0_i32_19 = arith.constant 0 : i32
    %40 = arith.cmpi eq, %c16_i32_18, %c0_i32_19 : i32
    %c1_i32_20 = arith.constant 1 : i32
    %41 = arith.select %40, %c1_i32_20, %c16_i32_18 : i32
    %42 = vector.broadcast %41 : i32 to vector<128x1xi32>
    %43 = arith.remsi %39, %42 : vector<128x1xi32>
    %c0_i32_21 = arith.constant 0 : i32
    %44 = vector.broadcast %c0_i32_21 : i32 to vector<128x1xi32>
    %45 = arith.cmpi ne, %43, %44 : vector<128x1xi32>
    %c0_i32_22 = arith.constant 0 : i32
    %46 = vector.broadcast %c0_i32_22 : i32 to vector<128x1xi32>
    %47 = arith.cmpi slt, %43, %46 : vector<128x1xi32>
    %c0_i32_23 = arith.constant 0 : i32
    %48 = arith.cmpi slt, %41, %c0_i32_23 : i32
    %49 = vector.broadcast %48 : i1 to vector<128x1xi1>
    %50 = vector.broadcast %49 : vector<128x1xi1> to vector<128x1xi1>
    %51 = arith.xori %47, %50 : vector<128x1xi1>
    %52 = arith.andi %51, %45 : vector<128x1xi1>
    %53 = vector.broadcast %41 : i32 to vector<128x1xi32>
    %54 = arith.addi %43, %53 : vector<128x1xi32>
    %55 = arith.select %52, %54, %43 : vector<128x1xi1>, vector<128x1xi32>
    %c1_i32_24 = arith.constant 1 : i32
    %56 = vector.broadcast %c1_i32_24 : i32 to vector<128x1xi32>
    %57 = arith.cmpi sge, %55, %56 : vector<128x1xi32>
    %c14_i32 = arith.constant 14 : i32
    %58 = vector.broadcast %c14_i32 : i32 to vector<128x1xi32>
    %59 = arith.cmpi sle, %55, %58 : vector<128x1xi32>
    %cst_25 = arith.constant 0.000000e+00 : f32
    %60 = vector.broadcast %cst_25 : f32 to vector<128x64xf32>
    %61 = vector.extract_strided_slice %38 {offsets = [0, 0], sizes = [128, 32], strides = [1, 1]} : vector<162x32xbf16> to vector<128x32xbf16>
    %cst_26 = arith.constant 0.000000e+00 : bf16
    %62 = vector.shape_cast %57 : vector<128x1xi1> to vector<128x1xi1>
    %63 = vector.broadcast %62 : vector<128x1xi1> to vector<128x32xi1>
    %64 = vector.broadcast %cst_26 : bf16 to vector<128x32xbf16>
    %65 = arith.select %63, %61, %64 : vector<128x32xi1>, vector<128x32xbf16>
    %c0_27 = arith.constant 0 : index
    %c0_28 = arith.constant 0 : index
    %66 = vector.load %arg7[%c0_27, %c0_28] : memref<288x64xbf16, #tpu.memory_space<vmem>>, vector<32x64xbf16>
    %cst_29 = arith.constant dense<0.000000e+00> : vector<128x64xf32>
    %67 = tpu.matmul %65, %66, %cst_29 {dimension_numbers = #tpu.dot_dimension_numbers<[1], [0], [0], [1], [0, 0, 1, 1], [], []>} : vector<128x32xbf16>, vector<32x64xbf16>, vector<128x64xf32> -> vector<128x64xf32>
    %68 = arith.addf %60, %67 : vector<128x64xf32>
    %69 = vector.extract_strided_slice %38 {offsets = [1, 0], sizes = [128, 32], strides = [1, 1]} : vector<162x32xbf16> to vector<128x32xbf16>
    %c32 = arith.constant 32 : index
    %c0_30 = arith.constant 0 : index
    %70 = vector.load %arg7[%c32, %c0_30] : memref<288x64xbf16, #tpu.memory_space<vmem>>, vector<32x64xbf16>
    %cst_31 = arith.constant dense<0.000000e+00> : vector<128x64xf32>
    %71 = tpu.matmul %69, %70, %cst_31 {dimension_numbers = #tpu.dot_dimension_numbers<[1], [0], [0], [1], [0, 0, 1, 1], [], []>} : vector<128x32xbf16>, vector<32x64xbf16>, vector<128x64xf32> -> vector<128x64xf32>
    %72 = arith.addf %68, %71 : vector<128x64xf32>
    %73 = vector.extract_strided_slice %38 {offsets = [2, 0], sizes = [128, 32], strides = [1, 1]} : vector<162x32xbf16> to vector<128x32xbf16>
    %cst_32 = arith.constant 0.000000e+00 : bf16
    %74 = vector.shape_cast %59 : vector<128x1xi1> to vector<128x1xi1>
    %75 = vector.broadcast %74 : vector<128x1xi1> to vector<128x32xi1>
    %76 = vector.broadcast %cst_32 : bf16 to vector<128x32xbf16>
    %77 = arith.select %75, %73, %76 : vector<128x32xi1>, vector<128x32xbf16>
    %c64 = arith.constant 64 : index
    %c0_33 = arith.constant 0 : index
    %78 = vector.load %arg7[%c64, %c0_33] : memref<288x64xbf16, #tpu.memory_space<vmem>>, vector<32x64xbf16>
    %cst_34 = arith.constant dense<0.000000e+00> : vector<128x64xf32>
    %79 = tpu.matmul %77, %78, %cst_34 {dimension_numbers = #tpu.dot_dimension_numbers<[1], [0], [0], [1], [0, 0, 1, 1], [], []>} : vector<128x32xbf16>, vector<32x64xbf16>, vector<128x64xf32> -> vector<128x64xf32>
    %80 = arith.addf %72, %79 : vector<128x64xf32>
    %81 = vector.extract_strided_slice %38 {offsets = [16, 0], sizes = [128, 32], strides = [1, 1]} : vector<162x32xbf16> to vector<128x32xbf16>
    %cst_35 = arith.constant 0.000000e+00 : bf16
    %82 = vector.shape_cast %57 : vector<128x1xi1> to vector<128x1xi1>
    %83 = vector.broadcast %82 : vector<128x1xi1> to vector<128x32xi1>
    %84 = vector.broadcast %cst_35 : bf16 to vector<128x32xbf16>
    %85 = arith.select %83, %81, %84 : vector<128x32xi1>, vector<128x32xbf16>
    %c96 = arith.constant 96 : index
    %c0_36 = arith.constant 0 : index
    %86 = vector.load %arg7[%c96, %c0_36] : memref<288x64xbf16, #tpu.memory_space<vmem>>, vector<32x64xbf16>
    %cst_37 = arith.constant dense<0.000000e+00> : vector<128x64xf32>
    %87 = tpu.matmul %85, %86, %cst_37 {dimension_numbers = #tpu.dot_dimension_numbers<[1], [0], [0], [1], [0, 0, 1, 1], [], []>} : vector<128x32xbf16>, vector<32x64xbf16>, vector<128x64xf32> -> vector<128x64xf32>
    %88 = arith.addf %80, %87 : vector<128x64xf32>
    %89 = vector.extract_strided_slice %38 {offsets = [17, 0], sizes = [128, 32], strides = [1, 1]} : vector<162x32xbf16> to vector<128x32xbf16>
    %c128 = arith.constant 128 : index
    %c0_38 = arith.constant 0 : index
    %90 = vector.load %arg7[%c128, %c0_38] : memref<288x64xbf16, #tpu.memory_space<vmem>>, vector<32x64xbf16>
    %cst_39 = arith.constant dense<0.000000e+00> : vector<128x64xf32>
    %91 = tpu.matmul %89, %90, %cst_39 {dimension_numbers = #tpu.dot_dimension_numbers<[1], [0], [0], [1], [0, 0, 1, 1], [], []>} : vector<128x32xbf16>, vector<32x64xbf16>, vector<128x64xf32> -> vector<128x64xf32>
    %92 = arith.addf %88, %91 : vector<128x64xf32>
    %93 = vector.extract_strided_slice %38 {offsets = [18, 0], sizes = [128, 32], strides = [1, 1]} : vector<162x32xbf16> to vector<128x32xbf16>
    %cst_40 = arith.constant 0.000000e+00 : bf16
    %94 = vector.shape_cast %59 : vector<128x1xi1> to vector<128x1xi1>
    %95 = vector.broadcast %94 : vector<128x1xi1> to vector<128x32xi1>
    %96 = vector.broadcast %cst_40 : bf16 to vector<128x32xbf16>
    %97 = arith.select %95, %93, %96 : vector<128x32xi1>, vector<128x32xbf16>
    %c160 = arith.constant 160 : index
    %c0_41 = arith.constant 0 : index
    %98 = vector.load %arg7[%c160, %c0_41] : memref<288x64xbf16, #tpu.memory_space<vmem>>, vector<32x64xbf16>
    %cst_42 = arith.constant dense<0.000000e+00> : vector<128x64xf32>
    %99 = tpu.matmul %97, %98, %cst_42 {dimension_numbers = #tpu.dot_dimension_numbers<[1], [0], [0], [1], [0, 0, 1, 1], [], []>} : vector<128x32xbf16>, vector<32x64xbf16>, vector<128x64xf32> -> vector<128x64xf32>
    %100 = arith.addf %92, %99 : vector<128x64xf32>
    %101 = vector.extract_strided_slice %38 {offsets = [32, 0], sizes = [128, 32], strides = [1, 1]} : vector<162x32xbf16> to vector<128x32xbf16>
    %cst_43 = arith.constant 0.000000e+00 : bf16
    %102 = vector.shape_cast %57 : vector<128x1xi1> to vector<128x1xi1>
    %103 = vector.broadcast %102 : vector<128x1xi1> to vector<128x32xi1>
    %104 = vector.broadcast %cst_43 : bf16 to vector<128x32xbf16>
    %105 = arith.select %103, %101, %104 : vector<128x32xi1>, vector<128x32xbf16>
    %c192 = arith.constant 192 : index
    %c0_44 = arith.constant 0 : index
    %106 = vector.load %arg7[%c192, %c0_44] : memref<288x64xbf16, #tpu.memory_space<vmem>>, vector<32x64xbf16>
    %cst_45 = arith.constant dense<0.000000e+00> : vector<128x64xf32>
    %107 = tpu.matmul %105, %106, %cst_45 {dimension_numbers = #tpu.dot_dimension_numbers<[1], [0], [0], [1], [0, 0, 1, 1], [], []>} : vector<128x32xbf16>, vector<32x64xbf16>, vector<128x64xf32> -> vector<128x64xf32>
    %108 = arith.addf %100, %107 : vector<128x64xf32>
    %109 = vector.extract_strided_slice %38 {offsets = [33, 0], sizes = [128, 32], strides = [1, 1]} : vector<162x32xbf16> to vector<128x32xbf16>
    %c224 = arith.constant 224 : index
    %c0_46 = arith.constant 0 : index
    %110 = vector.load %arg7[%c224, %c0_46] : memref<288x64xbf16, #tpu.memory_space<vmem>>, vector<32x64xbf16>
    %cst_47 = arith.constant dense<0.000000e+00> : vector<128x64xf32>
    %111 = tpu.matmul %109, %110, %cst_47 {dimension_numbers = #tpu.dot_dimension_numbers<[1], [0], [0], [1], [0, 0, 1, 1], [], []>} : vector<128x32xbf16>, vector<32x64xbf16>, vector<128x64xf32> -> vector<128x64xf32>
    %112 = arith.addf %108, %111 : vector<128x64xf32>
    %113 = vector.extract_strided_slice %38 {offsets = [34, 0], sizes = [128, 32], strides = [1, 1]} : vector<162x32xbf16> to vector<128x32xbf16>
    %cst_48 = arith.constant 0.000000e+00 : bf16
    %114 = vector.shape_cast %59 : vector<128x1xi1> to vector<128x1xi1>
    %115 = vector.broadcast %114 : vector<128x1xi1> to vector<128x32xi1>
    %116 = vector.broadcast %cst_48 : bf16 to vector<128x32xbf16>
    %117 = arith.select %115, %113, %116 : vector<128x32xi1>, vector<128x32xbf16>
    %c256 = arith.constant 256 : index
    %c0_49 = arith.constant 0 : index
    %118 = vector.load %arg7[%c256, %c0_49] : memref<288x64xbf16, #tpu.memory_space<vmem>>, vector<32x64xbf16>
    %cst_50 = arith.constant dense<0.000000e+00> : vector<128x64xf32>
    %119 = tpu.matmul %117, %118, %cst_50 {dimension_numbers = #tpu.dot_dimension_numbers<[1], [0], [0], [1], [0, 0, 1, 1], [], []>} : vector<128x32xbf16>, vector<32x64xbf16>, vector<128x64xf32> -> vector<128x64xf32>
    %120 = arith.addf %112, %119 : vector<128x64xf32>
    %c0_51 = arith.constant 0 : index
    %c0_52 = arith.constant 0 : index
    %121 = vector.load %arg8[%c0_51, %c0_52] : memref<1x64xf32, #tpu.memory_space<vmem>>, vector<1x64xf32>
    %122 = vector.broadcast %121 : vector<1x64xf32> to vector<128x64xf32>
    %123 = arith.addf %120, %122 : vector<128x64xf32>
    %cst_53 = arith.constant 0.000000e+00 : f32
    %124 = vector.broadcast %cst_53 : f32 to vector<128x64xf32>
    %125 = arith.cmpf ogt, %123, %124 : vector<128x64xf32>
    %cst_54 = arith.constant 1.000000e-01 : f32
    %126 = vector.broadcast %cst_54 : f32 to vector<128x64xf32>
    %127 = arith.mulf %126, %123 : vector<128x64xf32>
    %128 = arith.select %125, %123, %127 : vector<128x64xi1>, vector<128x64xf32>
    %c0_55 = arith.constant 0 : index
    %c0_56 = arith.constant 0 : index
    %c0_57 = arith.constant 0 : index
    %129 = vector.load %arg2[%c0_55, %c0_56, %c0_57] : memref<1x128x64xf32, #tpu.memory_space<vmem>>, vector<1x128x64xf32>
    %130 = vector.shape_cast %129 : vector<1x128x64xf32> to vector<128x64xf32>
    %131 = arith.addf %128, %130 : vector<128x64xf32>
    %c0_58 = arith.constant 0 : index
    %c0_59 = arith.constant 0 : index
    %c0_60 = arith.constant 0 : index
    %132 = vector.load %arg9[%c0_58, %c0_59, %c0_60] : memref<1x128x64xf32, #tpu.memory_space<vmem>>, vector<1x128x64xf32>
    %133 = vector.shape_cast %132 : vector<1x128x64xf32> to vector<128x64xf32>
    %134 = vector.shape_cast %131 : vector<128x64xf32> to vector<1x128x64xf32>
    tpu.vector_store %arg9[%c0_58, %c0_59, %c0_60], %134 {strides = array<i32>} : memref<1x128x64xf32, #tpu.memory_space<vmem>>, vector<1x128x64xf32>,
    return
  }
  func.func @transform_0(%arg0: i32, %arg1: i32) -> (i32, i32, i32) {
    %c0_i32 = arith.constant 0 : i32
    %c0_i32_0 = arith.constant 0 : i32
    return %arg0, %arg1, %c0_i32 : i32, i32, i32
  }
  func.func @transform_1(%arg0: i32, %arg1: i32) -> (i32, i32, i32, i32) {
    %c0_i32 = arith.constant 0 : i32
    %c0_i32_0 = arith.constant 0 : i32
    %c0_i32_1 = arith.constant 0 : i32
    return %arg0, %arg1, %c0_i32, %c0_i32_0 : i32, i32, i32, i32
  }
  func.func @transform_2(%arg0: i32, %arg1: i32) -> (i32, i32, i32, i32) {
    %c0_i32 = arith.constant 0 : i32
    %c0_i32_0 = arith.constant 0 : i32
    %c0_i32_1 = arith.constant 0 : i32
    return %arg0, %arg1, %c0_i32, %c0_i32_0 : i32, i32, i32, i32
  }
  func.func @transform_3(%arg0: i32, %arg1: i32) -> (i32, i32) {
    %c0_i32 = arith.constant 0 : i32
    %c0_i32_0 = arith.constant 0 : i32
    %c0_i32_1 = arith.constant 0 : i32
    return %c0_i32, %c0_i32_0 : i32, i32
  }
  func.func @transform_4(%arg0: i32, %arg1: i32) -> (i32, i32) {
    %c0_i32 = arith.constant 0 : i32
    %c0_i32_0 = arith.constant 0 : i32
    %c0_i32_1 = arith.constant 0 : i32
    return %c0_i32, %c0_i32_0 : i32, i32
  }
  func.func @transform_5(%arg0: i32, %arg1: i32) -> (i32, i32) {
    %c0_i32 = arith.constant 0 : i32
    %c0_i32_0 = arith.constant 0 : i32
    %c0_i32_1 = arith.constant 0 : i32
    return %c0_i32, %c0_i32_0 : i32, i32
  }
  func.func @transform_6(%arg0: i32, %arg1: i32) -> (i32, i32) {
    %c0_i32 = arith.constant 0 : i32
    %c0_i32_0 = arith.constant 0 : i32
    %c0_i32_1 = arith.constant 0 : i32
    return %c0_i32, %c0_i32_0 : i32, i32
  }
  func.func @transform_7(%arg0: i32, %arg1: i32) -> (i32, i32, i32) {
    %c0_i32 = arith.constant 0 : i32
    %c0_i32_0 = arith.constant 0 : i32
    return %arg0, %arg1, %c0_i32 : i32, i32, i32
  }
}

</mosaic_0001>

<llo_original>
// kernel: tpu_custom_call.1
$region0: #{tpu_custom_call.1}
  #allocation0 [shape = 'u32[]', space=smem, size = 0x4, offset = 0x4, fixed_abs, tag = 'smem constant byte address 0x4 - core index']
  #allocation1 [shape = 'u32[72,128]{1,0:T(1,128)}', space=vmem, size = 0x9000, scoped, tag = 'internal scratch']
  %s0 = inlined_call_operand.vmem [shape: f32[2,256,64], index: 0, kind: input, shape index: {}]
  %s1 = inlined_call_operand.vmem [shape: f32[2,2,16,64], index: 1, kind: input, shape index: {}]
  %s2 = inlined_call_operand.vmem [shape: f32[2,2,16,64], index: 2, kind: input, shape index: {}]
  %s3 = inlined_call_operand.vmem [shape: bf16[64,32], index: 3, kind: input, shape index: {}]
  %s4 = inlined_call_operand.vmem [shape: f32[1,32], index: 4, kind: input, shape index: {}]
  %s5 = inlined_call_operand.vmem [shape: bf16[288,64], index: 5, kind: input, shape index: {}]
  %s6 = inlined_call_operand.vmem [shape: f32[1,64], index: 6, kind: input, shape index: {}]
  %s7 = inlined_call_operand.vmem [shape: f32[2,256,64], index: 7, kind: output, shape index: {}]
  %s8 = sld [smem:[#allocation0]]
  $region61: #{tpu_custom_call.1} parent=0
    _
  %s10 = ssub.s32 1, %s8
  %s11 = scalar_select 0, %s10, %s8
  loop: start=0, step=1, limit=6
  $region2: #{tpu_custom_call.1} parent=0 // loop_pre_header
    _
  $region3: #{tpu_custom_call.1} parent=0 // loop_header
    %s13 = sphi 0, %s17
    %p14 = scmp.ge.s32.totalorder %s13, 6
    %s20 = sphi 0, %s32
    %s21 = sphi 0, %s28
    %s22 = sphi 0, %s20
    %s23 = sphi 0, %s21
    %s24 = sphi 0, %s22
    %s25 = sphi 0, %s23
    %s37 = sphi 0, %s39
    %s40 = sphi 0, %s37
    %s41 = sphi 0, %s40
    %s57 = sphi 0, %s41
    %s65 = sphi 0, %s67
    %s68 = sphi 0, %s65
    %s69 = sphi 0, %s68
    %s85 = sphi 0, %s69
    %s93 = sphi 0, %s95
    %s96 = sphi 0, %s93
    %s97 = sphi 0, %s96
    %s113 = sphi 0, %s97
    %s117 = sphi 0, %s117
    %s119 = sphi 0, %s117
    %s120 = sphi 0, %s119
    %s134 = sphi 0, %s120
    %s138 = sphi 0, %s138
    %s140 = sphi 0, %s138
    %s141 = sphi 0, %s140
    %s155 = sphi 0, %s141
    %s159 = sphi 0, %s159
    %s161 = sphi 0, %s159
    %s162 = sphi 0, %s161
    %s176 = sphi 0, %s162
    %s180 = sphi 0, %s180
    %s182 = sphi 0, %s180
    %s183 = sphi 0, %s182
    %s197 = sphi 0, %s183
    %s205 = sphi 0, %s207
    %s208 = sphi 0, %s205
    %s209 = sphi 0, %s208
    %s225 = sphi 0, %s209
  $region4: #{tpu_custom_call.1} parent=0 // loop_header_branch
    %16 = sbr.rel (%p14) target = $region8
  $region5: #{tpu_custom_call.1} parent=0 // loop_body
    %s18 = ssub.s32 %s13, 1
    %s19 = ssub.s32 %s13, 2
    %s26 = sadd.s32 1, %s21
    %p27 = scmp.ge.s32.totalorder %s26, 2
    %s28 = scalar_select %p27, 0, %s26
    %s29 = sadd.s32 1, %s20
    %s30 = scalar_select %p27, %s29, %s20
    %p31 = scmp.ge.s32.totalorder %s30, 2
    %s32 = scalar_select %p31, 0, %s30
    %s33 = ssub.s32 %s20, %s32
    %s34 = ssub.s32 %s21, %s28
    %s35 = sor.u32 %s33, %s34
    %p36 = scmp.eq.s32.totalorder %s35, 0
    %s38 = sadd.s32 %s37, 1
    %s39 = scalar_select %p36, %s37, %s38
    %p42 = pneg %p36
    %p43 = scmp.eq.s32.totalorder %s13, 3
    %p44 = por %p42, %p43
    %p45 = scmp.ne.s32.totalorder %s37, %s40
    %p46 = scmp.eq.s32.totalorder %s13, 0
    %p47 = por %p45, %p46
    %p48 = scmp.ne.s32.totalorder %s37, %s40
    %p49 = scmp.eq.s32.totalorder %s18, 3
    %p50 = por %p48, %p49
    %p51 = scmp.ne.s32.totalorder %s40, %s41
    %p52 = scmp.eq.s32.totalorder %s18, 0
    %p53 = por %p51, %p52
    %p54 = scmp.ne.s32.totalorder %s40, %s41
    %p55 = scmp.eq.s32.totalorder %s19, 3
    %p56 = por %p54, %p55
    %p58 = scmp.ne.s32.totalorder %s41, %s57
    %p59 = scmp.eq.s32.totalorder %s19, 0
    %p60 = por %p58, %p59
    %s61 = ssub.s32 %s20, %s32
    %s62 = ssub.s32 %s21, %s28
    %s63 = sor.u32 %s61, %s62
    %p64 = scmp.eq.s32.totalorder %s63, 0
    %s66 = sadd.s32 %s65, 1
    %s67 = scalar_select %p64, %s65, %s66
    %p70 = pneg %p64
    %p71 = scmp.eq.s32.totalorder %s13, 3
    %p72 = por %p70, %p71
    %p73 = scmp.ne.s32.totalorder %s65, %s68
    %p74 = scmp.eq.s32.totalorder %s13, 0
    %p75 = por %p73, %p74
    %p76 = scmp.ne.s32.totalorder %s65, %s68
    %p77 = scmp.eq.s32.totalorder %s18, 3
    %p78 = por %p76, %p77
    %p79 = scmp.ne.s32.totalorder %s68, %s69
    %p80 = scmp.eq.s32.totalorder %s18, 0
    %p81 = por %p79, %p80
    %p82 = scmp.ne.s32.totalorder %s68, %s69
    %p83 = scmp.eq.s32.totalorder %s19, 3
    %p84 = por %p82, %p83
    %p86 = scmp.ne.s32.totalorder %s69, %s85
    %p87 = scmp.eq.s32.totalorder %s19, 0
    %p88 = por %p86, %p87
    %s89 = ssub.s32 %s20, %s32
    %s90 = ssub.s32 %s21, %s28
    %s91 = sor.u32 %s89, %s90
    %p92 = scmp.eq.s32.totalorder %s91, 0
    %s94 = sadd.s32 %s93, 1
    %s95 = scalar_select %p92, %s93, %s94
    %p98 = pneg %p92
    %p99 = scmp.eq.s32.totalorder %s13, 3
    %p100 = por %p98, %p99
    %p101 = scmp.ne.s32.totalorder %s93, %s96
    %p102 = scmp.eq.s32.totalorder %s13, 0
    %p103 = por %p101, %p102
    %p104 = scmp.ne.s32.totalorder %s93, %s96
    %p105 = scmp.eq.s32.totalorder %s18, 3
    %p106 = por %p104, %p105
    %p107 = scmp.ne.s32.totalorder %s96, %s97
    %p108 = scmp.eq.s32.totalorder %s18, 0
    %p109 = por %p107, %p108
    %p110 = scmp.ne.s32.totalorder %s96, %s97
    %p111 = scmp.eq.s32.totalorder %s19, 3
    %p112 = por %p110, %p111
    %p114 = scmp.ne.s32.totalorder %s97, %s113
    %p115 = scmp.eq.s32.totalorder %s19, 0
    %p116 = por %p114, %p115
    %s118 = sadd.s32 %s117, 1
    %p121 = scmp.eq.s32.totalorder %s13, 3
    %p122 = scmp.ne.s32.totalorder %s117, %s119
    %p123 = scmp.eq.s32.totalorder %s13, 0
    %p124 = por %p122, %p123
    %p125 = scmp.ne.s32.totalorder %s117, %s119
    %p126 = scmp.eq.s32.totalorder %s18, 3
    %p127 = por %p125, %p126
    %p128 = scmp.ne.s32.totalorder %s119, %s120
    %p129 = scmp.eq.s32.totalorder %s18, 0
    %p130 = por %p128, %p129
    %p131 = scmp.ne.s32.totalorder %s119, %s120
    %p132 = scmp.eq.s32.totalorder %s19, 3
    %p133 = por %p131, %p132
    %p135 = scmp.ne.s32.totalorder %s120, %s134
    %p136 = scmp.eq.s32.totalorder %s19, 0
    %p137 = por %p135, %p136
    %s139 = sadd.s32 %s138, 1
    %p142 = scmp.eq.s32.totalorder %s13, 3
    %p143 = scmp.ne.s32.totalorder %s138, %s140
    %p144 = scmp.eq.s32.totalorder %s13, 0
    %p145 = por %p143, %p144
    %p146 = scmp.ne.s32.totalorder %s138, %s140
    %p147 = scmp.eq.s32.totalorder %s18, 3
    %p148 = por %p146, %p147
    %p149 = scmp.ne.s32.totalorder %s140, %s141
    %p150 = scmp.eq.s32.totalorder %s18, 0
    %p151 = por %p149, %p150
    %p152 = scmp.ne.s32.totalorder %s140, %s141
    %p153 = scmp.eq.s32.totalorder %s19, 3
    %p154 = por %p152, %p153
    %p156 = scmp.ne.s32.totalorder %s141, %s155
    %p157 = scmp.eq.s32.totalorder %s19, 0
    %p158 = por %p156, %p157
    %s160 = sadd.s32 %s159, 1
    %p163 = scmp.eq.s32.totalorder %s13, 3
    %p164 = scmp.ne.s32.totalorder %s159, %s161
    %p165 = scmp.eq.s32.totalorder %s13, 0
    %p166 = por %p164, %p165
    %p167 = scmp.ne.s32.totalorder %s159, %s161
    %p168 = scmp.eq.s32.totalorder %s18, 3
    %p169 = por %p167, %p168
    %p170 = scmp.ne.s32.totalorder %s161, %s162
    %p171 = scmp.eq.s32.totalorder %s18, 0
    %p172 = por %p170, %p171
    %p173 = scmp.ne.s32.totalorder %s161, %s162
    %p174 = scmp.eq.s32.totalorder %s19, 3
    %p175 = por %p173, %p174
    %p177 = scmp.ne.s32.totalorder %s162, %s176
    %p178 = scmp.eq.s32.totalorder %s19, 0
    %p179 = por %p177, %p178
    %s181 = sadd.s32 %s180, 1
    %p184 = scmp.eq.s32.totalorder %s13, 3
    %p185 = scmp.ne.s32.totalorder %s180, %s182
    %p186 = scmp.eq.s32.totalorder %s13, 0
    %p187 = por %p185, %p186
    %p188 = scmp.ne.s32.totalorder %s180, %s182
    %p189 = scmp.eq.s32.totalorder %s18, 3
    %p190 = por %p188, %p189
    %p191 = scmp.ne.s32.totalorder %s182, %s183
    %p192 = scmp.eq.s32.totalorder %s18, 0
    %p193 = por %p191, %p192
    %p194 = scmp.ne.s32.totalorder %s182, %s183
    %p195 = scmp.eq.s32.totalorder %s19, 3
    %p196 = por %p194, %p195
    %p198 = scmp.ne.s32.totalorder %s183, %s197
    %p199 = scmp.eq.s32.totalorder %s19, 0
    %p200 = por %p198, %p199
    %s201 = ssub.s32 %s20, %s32
    %s202 = ssub.s32 %s21, %s28
    %s203 = sor.u32 %s201, %s202
    %p204 = scmp.eq.s32.totalorder %s203, 0
    %s206 = sadd.s32 %s205, 1
    %s207 = scalar_select %p204, %s205, %s206
    %p210 = pneg %p204
    %p211 = scmp.eq.s32.totalorder %s13, 3
    %p212 = por %p210, %p211
    %p213 = scmp.ne.s32.totalorder %s205, %s208
    %p214 = scmp.eq.s32.totalorder %s13, 0
    %p215 = por %p213, %p214
    %p216 = scmp.ne.s32.totalorder %s205, %s208
    %p217 = scmp.eq.s32.totalorder %s18, 3
    %p218 = por %p216, %p217
    %p219 = scmp.ne.s32.totalorder %s208, %s209
    %p220 = scmp.eq.s32.totalorder %s18, 0
    %p221 = por %p219, %p220
    %p222 = scmp.ne.s32.totalorder %s208, %s209
    %p223 = scmp.eq.s32.totalorder %s19, 3
    %p224 = por %p222, %p223
    %p226 = scmp.ne.s32.totalorder %s209, %s225
    %p227 = scmp.eq.s32.totalorder %s19, 0
    %p228 = por %p226, %p227
    %p229 = scmp.le.s32.totalorder 1, %s13
    %p230 = scmp.lt.s32.totalorder %s13, 5
    %p231 = pnand %p229, %p230
    %p232 = pneg %p231
    // Predicated region
    $region9: #{tpu_custom_call.1} parent=5 // pred_check
      _
    $region10: #{tpu_custom_call.1} parent=5 // pred_check_branch
      %234 = sbr.rel (%p231) target = $region12
    $region11: #{tpu_custom_call.1} parent=5 // pred_region
      %s235 = ssub.s32 %s13, 1
      // Predicated region
      $region13: #{tpu_custom_call.1} parent=11 // pred_check
        %p236 = pneg %p130
      $region14: #{tpu_custom_call.1} parent=11 // pred_check_branch
        %238 = sbr.rel (%p236) target = $region16
      $region15: #{tpu_custom_call.1} parent=11 // pred_region
        _
      $region16: #{tpu_custom_call.1} parent=11 // pred_fallthru
        _
      // Predicated region
      $region17: #{tpu_custom_call.1} parent=11 // pred_check
        %p239 = pneg %p151
      $region18: #{tpu_custom_call.1} parent=11 // pred_check_branch
        %241 = sbr.rel (%p239) target = $region20
      $region19: #{tpu_custom_call.1} parent=11 // pred_region
        _
      $region20: #{tpu_custom_call.1} parent=11 // pred_fallthru
        _
      // Predicated region
      $region21: #{tpu_custom_call.1} parent=11 // pred_check
        %p242 = pneg %p172
      $region22: #{tpu_custom_call.1} parent=11 // pred_check_branch
        %244 = sbr.rel (%p242) target = $region24
      $region23: #{tpu_custom_call.1} parent=11 // pred_region
        _
      $region24: #{tpu_custom_call.1} parent=11 // pred_fallthru
        _
      // Predicated region
      $region25: #{tpu_custom_call.1} parent=11 // pred_check
        %p245 = pneg %p193
      $region26: #{tpu_custom_call.1} parent=11 // pred_check_branch
        %247 = sbr.rel (%p245) target = $region28
      $region27: #{tpu_custom_call.1} parent=11 // pred_region
        _
      $region28: #{tpu_custom_call.1} parent=11 // pred_fallthru
        _
    $region12: #{tpu_custom_call.1} parent=5 // pred_fallthru
      _
    %p248 = scmp.lt.s32.totalorder %s13, 4
    // Predicated region
    $region29: #{tpu_custom_call.1} parent=5 // pred_check
      %p249 = pneg %p248
    $region30: #{tpu_custom_call.1} parent=5 // pred_check_branch
      %251 = sbr.rel (%p249) target = $region32
    $region31: #{tpu_custom_call.1} parent=5 // pred_region
      // Predicated region
      $region33: #{tpu_custom_call.1} parent=31 // pred_check
        %p252 = pneg %p47
      $region34: #{tpu_custom_call.1} parent=31 // pred_check_branch
        %254 = sbr.rel (%p252) target = $region36
      $region35: #{tpu_custom_call.1} parent=31 // pred_region
        %s255 = smul.u32 16, %s21
        %p256 = scmp.lt.s32.totalorder %s20, 1
        %s257 = scalar_select %p256, %s20, 1
        %p258 = scmp.lt.s32.totalorder %s255, 31
        %s259 = scalar_select %p258, %s255, 31
        %s260 = smul.addr %s257, 32
        %s261 = sadd.s32 %s259, %s260
        %s262 = smul.addr %s261, 8
        %s263 = scalar_lea.vmem %s0, %s262
        %s264 = smul.u32 16, %s21
      $region36: #{tpu_custom_call.1} parent=31 // pred_fallthru
        _
      // Predicated region
      $region37: #{tpu_custom_call.1} parent=31 // pred_check
        %p265 = pneg %p75
      $region38: #{tpu_custom_call.1} parent=31 // pred_check_branch
        %267 = sbr.rel (%p265) target = $region40
      $region39: #{tpu_custom_call.1} parent=31 // pred_region
        %p268 = scmp.lt.s32.totalorder %s20, 1
        %s269 = scalar_select %p268, %s20, 1
        %p270 = scmp.lt.s32.totalorder %s21, 1
        %s271 = scalar_select %p270, %s21, 1
        %s272 = smul.addr %s271, 2
        %s273 = smul.addr %s269, 4
        %s274 = sadd.s32 %s272, %s273
        %s275 = smul.addr %s274, 8
        %s276 = scalar_lea.vmem %s1, %s275
      $region40: #{tpu_custom_call.1} parent=31 // pred_fallthru
        _
      // Predicated region
      $region41: #{tpu_custom_call.1} parent=31 // pred_check
        %p277 = pneg %p103
      $region42: #{tpu_custom_call.1} parent=31 // pred_check_branch
        %279 = sbr.rel (%p277) target = $region44
      $region43: #{tpu_custom_call.1} parent=31 // pred_region
        %p280 = scmp.lt.s32.totalorder %s20, 1
        %s281 = scalar_select %p280, %s20, 1
        %p282 = scmp.lt.s32.totalorder %s21, 1
        %s283 = scalar_select %p282, %s21, 1
        %s284 = smul.addr %s283, 2
        %s285 = smul.addr %s281, 4
        %s286 = sadd.s32 %s284, %s285
        %s287 = smul.addr %s286, 8
        %s288 = scalar_lea.vmem %s2, %s287
      $region44: #{tpu_custom_call.1} parent=31 // pred_fallthru
        _
    $region32: #{tpu_custom_call.1} parent=5 // pred_fallthru
      _
    %p289 = scmp.le.s32.totalorder 1, %s13
    %p290 = scmp.lt.s32.totalorder %s13, 5
    %p291 = pnand %p289, %p290
    %p292 = pneg %p291
    // Predicated region
    $region45: #{tpu_custom_call.1} parent=5 // pred_check
      _
    $region46: #{tpu_custom_call.1} parent=5 // pred_check_branch
      %294 = sbr.rel (%p291) target = $region48
    $region47: #{tpu_custom_call.1} parent=5 // pred_region
      %s295 = ssub.s32 %s13, 1
      %s296 = smul.u32 16, %s23
      %p297 = scmp.lt.s32.totalorder %s22, 1
      %s298 = scalar_select %p297, %s22, 1
      %p299 = scmp.lt.s32.totalorder %s296, 31
      %s300 = scalar_select %p299, %s296, 31
      %s301 = smul.addr %s298, 32
      %s302 = sadd.s32 %s300, %s301
      %s303 = smul.addr %s302, 8
      %s304 = scalar_lea.vmem %s0, %s303
      %p305 = pneg %p53
      %p306 = pneg %p50
      %p307 = scmp.lt.s32.totalorder %s22, 1
      %s308 = scalar_select %p307, %s22, 1
      %p309 = scmp.lt.s32.totalorder %s23, 1
      %s310 = scalar_select %p309, %s23, 1
      %s311 = smul.addr %s310, 2
      %s312 = smul.addr %s308, 4
      %s313 = sadd.s32 %s311, %s312
      %s314 = smul.addr %s313, 8
      %s315 = scalar_lea.vmem %s1, %s314
      %p316 = pneg %p81
      %p317 = pneg %p78
      %p318 = scmp.lt.s32.totalorder %s22, 1
      %s319 = scalar_select %p318, %s22, 1
      %p320 = scmp.lt.s32.totalorder %s23, 1
      %s321 = scalar_select %p320, %s23, 1
      %s322 = smul.addr %s321, 2
      %s323 = smul.addr %s319, 4
      %s324 = sadd.s32 %s322, %s323
      %s325 = smul.addr %s324, 8
      %s326 = scalar_lea.vmem %s2, %s325
      %p327 = pneg %p109
      %p328 = pneg %p106
      %p329 = pneg %p130
      %p330 = pneg %p127
      %p331 = pneg %p151
      %p332 = pneg %p148
      %p333 = pneg %p172
      %p334 = pneg %p169
      %p335 = pneg %p193
      %p336 = pneg %p190
      %p337 = pneg %p221
      %p338 = pneg %p218
      %s339 = smul.u32 16, %s23
      %p340 = scmp.lt.s32.totalorder %s22, 1
      %s341 = scalar_select %p340, %s22, 1
      %p342 = scmp.lt.s32.totalorder %s339, 31
      %s343 = scalar_select %p342, %s339, 31
      %s344 = smul.addr %s341, 32
      %s345 = sadd.s32 %s343, %s344
      %s346 = smul.addr %s345, 8
      %s347 = scalar_lea.vmem %s7, %s346
      %s348 = smul.u32 16, %s23
      %p349 = scmp.lt.s32.totalorder %s22, 1
      %s350 = scalar_select %p349, %s22, 1
      %p351 = scmp.lt.s32.totalorder %s348, 31
      %s352 = scalar_select %p351, %s348, 31
      %s353 = smul.addr %s350, 32
      %s354 = sadd.s32 %s352, %s353
      %s355 = smul.addr %s354, 8
      %s356 = scalar_lea.vmem %s0, %s355
      %s357 = smul.u32 16, %s23
      %p358 = scmp.lt.s32.totalorder %s22, 1
      %s359 = scalar_select %p358, %s22, 1
      %p360 = scmp.lt.s32.totalorder %s23, 1
      %s361 = scalar_select %p360, %s23, 1
      %s362 = smul.addr %s361, 2
      %s363 = smul.addr %s359, 4
      %s364 = sadd.s32 %s362, %s363
      %s365 = smul.addr %s364, 8
      %s366 = scalar_lea.vmem %s1, %s365
      %p367 = scmp.lt.s32.totalorder %s22, 1
      %s368 = scalar_select %p367, %s22, 1
      %p369 = scmp.lt.s32.totalorder %s23, 1
      %s370 = scalar_select %p369, %s23, 1
      %s371 = smul.addr %s370, 2
      %s372 = smul.addr %s368, 4
      %s373 = sadd.s32 %s371, %s372
      %s374 = smul.addr %s373, 8
      %s375 = scalar_lea.vmem %s2, %s374
      %s376 = smul.u32 16, %s23
      %p377 = scmp.lt.s32.totalorder %s22, 1
      %s378 = scalar_select %p377, %s22, 1
      %p379 = scmp.lt.s32.totalorder %s376, 31
      %s380 = scalar_select %p379, %s376, 31
      %s381 = smul.addr %s378, 32
      %s382 = sadd.s32 %s380, %s381
      %s383 = smul.addr %s382, 8
      %s384 = scalar_lea.vmem %s7, %s383
      %s385 = smul.u32 16, %s23
      %v389 = vld [vmem:[%s366] sm:$0xff]
      %v390 = vld [vmem:[%s366 + $0x8] sm:$0xff]
      %v391 = vpack.c.bf16 %v389, %v389
      %v392 = vpack.c.bf16 %v390, %v390
      %v393 = vld [vmem:[%s356] sm:$0xff]
      %v394 = vld [vmem:[%s356 + $0x8] sm:$0xff]
      %v395 = vld [vmem:[%s356 + $0x10] sm:$0xff]
      %v396 = vld [vmem:[%s356 + $0x18] sm:$0xff]
      %v397 = vld [vmem:[%s356 + $0x20] sm:$0xff]
      %v398 = vld [vmem:[%s356 + $0x28] sm:$0xff]
      %v399 = vld [vmem:[%s356 + $0x30] sm:$0xff]
      %v400 = vld [vmem:[%s356 + $0x38] sm:$0xff]
      %v401 = vld [vmem:[%s356 + $0x40] sm:$0xff]
      %v402 = vld [vmem:[%s356 + $0x48] sm:$0xff]
      %v403 = vld [vmem:[%s356 + $0x50] sm:$0xff]
      %v404 = vld [vmem:[%s356 + $0x58] sm:$0xff]
      %v405 = vld [vmem:[%s356 + $0x60] sm:$0xff]
      %v406 = vld [vmem:[%s356 + $0x68] sm:$0xff]
      %v407 = vld [vmem:[%s356 + $0x70] sm:$0xff]
      %v408 = vld [vmem:[%s356 + $0x78] sm:$0xff]
      %v409 = vpack.c.bf16 %v393, %v393
      %v410 = vpack.c.bf16 %v394, %v394
      %v411 = vpack.c.bf16 %v395, %v395
      %v412 = vpack.c.bf16 %v396, %v396
      %v413 = vpack.c.bf16 %v397, %v397
      %v414 = vpack.c.bf16 %v398, %v398
      %v415 = vpack.c.bf16 %v399, %v399
      %v416 = vpack.c.bf16 %v400, %v400
      %v417 = vpack.c.bf16 %v401, %v401
      %v418 = vpack.c.bf16 %v402, %v402
      %v419 = vpack.c.bf16 %v403, %v403
      %v420 = vpack.c.bf16 %v404, %v404
      %v421 = vpack.c.bf16 %v405, %v405
      %v422 = vpack.c.bf16 %v406, %v406
      %v423 = vpack.c.bf16 %v407, %v407
      %v424 = vpack.c.bf16 %v408, %v408
      %v425 = vld [vmem:[%s375] sm:$0xff]
      %v426 = vld [vmem:[%s375 + $0x8] sm:$0xff]
      %v427 = vpack.c.bf16 %v425, %v425
      %v428 = vpack.c.bf16 %v426, %v426
      %v431 = vunpack.c.l.b16 %v391
      %v432 = vunpack.c.l.b16 %v392
      %v433 = vpack.c.b16 %v432, %v431
      %v450 = vunpack.c.l.b16 %v409
      %v451 = vunpack.c.l.b16 %v410
      %v452 = vunpack.c.l.b16 %v411
      %v453 = vunpack.c.l.b16 %v412
      %v454 = vunpack.c.l.b16 %v413
      %v455 = vunpack.c.l.b16 %v414
      %v456 = vunpack.c.l.b16 %v415
      %v457 = vunpack.c.l.b16 %v416
      %v458 = vunpack.c.l.b16 %v417
      %v459 = vunpack.c.l.b16 %v418
      %v460 = vunpack.c.l.b16 %v419
      %v461 = vunpack.c.l.b16 %v420
      %v462 = vunpack.c.l.b16 %v421
      %v463 = vunpack.c.l.b16 %v422
      %v464 = vunpack.c.l.b16 %v423
      %v465 = vunpack.c.l.b16 %v424
      %v466 = vpack.c.b16 %v451, %v450
      %v467 = vpack.c.b16 %v453, %v452
      %v468 = vpack.c.b16 %v455, %v454
      %v469 = vpack.c.b16 %v457, %v456
      %v470 = vpack.c.b16 %v459, %v458
      %v471 = vpack.c.b16 %v461, %v460
      %v472 = vpack.c.b16 %v463, %v462
      %v473 = vpack.c.b16 %v465, %v464
      %v476 = vunpack.c.l.b16 %v427
      %v477 = vunpack.c.l.b16 %v428
      %v478 = vpack.c.b16 %v477, %v476
      %v479 = vld [vmem:[%s3] sm:$0xf]
      %v480 = vld [vmem:[%s3 + $0x4] sm:$0xf]
      %v481 = vld [vmem:[%s3 + $0x8] sm:$0xf]
      %v482 = vld [vmem:[%s3 + $0xc] sm:$0xf]
      %v483 = vld [vmem:[%s3 + $0x10] sm:$0xf]
      %v484 = vld [vmem:[%s3 + $0x14] sm:$0xf]
      %v485 = vld [vmem:[%s3 + $0x18] sm:$0xf]
      %v486 = vld [vmem:[%s3 + $0x1c] sm:$0xf]
      %v487 = vld [vmem:[%s4] sm:$0x1]
      %v489 = vperm.slane %v487, 0
      %v499 = vunpack.c.l.b16 %v479
      %v500 = vunpack.c.l.b16 %v480
      %v501 = vunpack.c.l.b16 %v481
      %v502 = vunpack.c.l.b16 %v482
      %v503 = vunpack.c.l.b16 %v483
      %v504 = vunpack.c.l.b16 %v484
      %v505 = vunpack.c.l.b16 %v485
      %v506 = vunpack.c.l.b16 %v486
      %v507 = vpack.c.b16 %v500, %v499
      %v508 = vpack.c.b16 %v502, %v501
      %v509 = vpack.c.b16 %v504, %v503
      %v510 = vpack.c.b16 %v506, %v505
      %vm515 = vcmask 523264
      %v517 = vsel %vm515, %v433, 0
      %v520 = vsel %vm515, %v466, 0
      %v523 = vsel %vm515, %v467, 0
      %v526 = vsel %vm515, %v468, 0
      %v529 = vsel %vm515, %v469, 0
      %v532 = vsel %vm515, %v470, 0
      %v535 = vsel %vm515, %v471, 0
      %v538 = vsel %vm515, %v472, 0
      %v541 = vsel %vm515, %v473, 0
      %v544 = vsel %vm515, %v478, 0
      %546 = vmatpush.bf16.msra.mxu0 0
      %547 = vmatpush.bf16.msra.mxu0 0
      %548 = vmatpush.bf16.msra.mxu0 0
      %549 = vmatpush.bf16.msra.mxu0 0
      %550 = vmatpush.bf16.msra.mxu0 %v510
      %551 = vmatpush.bf16.msra.mxu0 %v509
      %552 = vmatpush.bf16.msra.mxu0 %v508
      %553 = vmatpush.bf16.msra.mxu0 %v507
      %554 = vmatmul.bf16.gmra.mxu0 %v517
      %v555 = vpop.f32.mrf.mxu0
      %v556 = vadd.f32 %v489, %v555
      %v557 = vpop.f32.mrf.mxu0
      %v558 = vadd.f32 %v489, %v557
      %559 = vmatmul.bf16.gmra.mxu0 %v520
      %v560 = vpop.f32.mrf.mxu0
      %v561 = vadd.f32 %v489, %v560
      %v562 = vpop.f32.mrf.mxu0
      %v563 = vadd.f32 %v489, %v562
      %564 = vmatmul.bf16.gmra.mxu0 %v523
      %v565 = vpop.f32.mrf.mxu0
      %v566 = vadd.f32 %v489, %v565
      %v567 = vpop.f32.mrf.mxu0
      %v568 = vadd.f32 %v489, %v567
      %569 = vmatmul.bf16.gmra.mxu0 %v526
      %v570 = vpop.f32.mrf.mxu0
      %v571 = vadd.f32 %v489, %v570
      %v572 = vpop.f32.mrf.mxu0
      %v573 = vadd.f32 %v489, %v572
      %574 = vmatmul.bf16.gmra.mxu0 %v529
      %v575 = vpop.f32.mrf.mxu0
      %v576 = vadd.f32 %v489, %v575
      %v577 = vpop.f32.mrf.mxu0
      %v578 = vadd.f32 %v489, %v577
      %579 = vmatmul.bf16.gmra.mxu0 %v532
      %v580 = vpop.f32.mrf.mxu0
      %v581 = vadd.f32 %v489, %v580
      %v582 = vpop.f32.mrf.mxu0
      %v583 = vadd.f32 %v489, %v582
      %584 = vmatmul.bf16.gmra.mxu0 %v535
      %v585 = vpop.f32.mrf.mxu0
      %v586 = vadd.f32 %v489, %v585
      %v587 = vpop.f32.mrf.mxu0
      %v588 = vadd.f32 %v489, %v587
      %589 = vmatmul.bf16.gmra.mxu0 %v538
      %v590 = vpop.f32.mrf.mxu0
      %v591 = vadd.f32 %v489, %v590
      %v592 = vpop.f32.mrf.mxu0
      %v593 = vadd.f32 %v489, %v592
      %594 = vmatmul.bf16.gmra.mxu0 %v541
      %v595 = vpop.f32.mrf.mxu0
      %v596 = vadd.f32 %v489, %v595
      %v597 = vpop.f32.mrf.mxu0
      %v598 = vadd.f32 %v489, %v597
      %599 = vmatmul.bf16.gmra.mxu0 %v544
      %v600 = vpop.f32.mrf.mxu0
      %v601 = vadd.f32 %v489, %v600
      %v602 = vpop.f32.mrf.mxu0
      %v603 = vadd.f32 %v489, %v602
      %604 = vdwg.mxu0
      %vm605 = vcmp.gt.f32.partialorder %v556, 0.0
      %vm606 = vcmp.gt.f32.partialorder %v558, 0.0
      %vm607 = vcmp.gt.f32.partialorder %v561, 0.0
      %vm608 = vcmp.gt.f32.partialorder %v563, 0.0
      %vm609 = vcmp.gt.f32.partialorder %v566, 0.0
      %vm610 = vcmp.gt.f32.partialorder %v568, 0.0
      %vm611 = vcmp.gt.f32.partialorder %v571, 0.0
      %vm612 = vcmp.gt.f32.partialorder %v573, 0.0
      %vm613 = vcmp.gt.f32.partialorder %v576, 0.0
      %vm614 = vcmp.gt.f32.partialorder %v578, 0.0
      %vm615 = vcmp.gt.f32.partialorder %v581, 0.0
      %vm616 = vcmp.gt.f32.partialorder %v583, 0.0
      %vm617 = vcmp.gt.f32.partialorder %v586, 0.0
      %vm618 = vcmp.gt.f32.partialorder %v588, 0.0
      %vm619 = vcmp.gt.f32.partialorder %v591, 0.0
      %vm620 = vcmp.gt.f32.partialorder %v593, 0.0
      %vm621 = vcmp.gt.f32.partialorder %v596, 0.0
      %vm622 = vcmp.gt.f32.partialorder %v598, 0.0
      %vm623 = vcmp.gt.f32.partialorder %v601, 0.0
      %vm624 = vcmp.gt.f32.partialorder %v603, 0.0
      %v625 = vmul.f32 %v556, 0.1
      %v626 = vmul.f32 %v558, 0.1
      %v627 = vmul.f32 %v561, 0.1
      %v628 = vmul.f32 %v563, 0.1
      %v629 = vmul.f32 %v566, 0.1
      %v630 = vmul.f32 %v568, 0.1
      %v631 = vmul.f32 %v571, 0.1
      %v632 = vmul.f32 %v573, 0.1
      %v633 = vmul.f32 %v576, 0.1
      %v634 = vmul.f32 %v578, 0.1
      %v635 = vmul.f32 %v581, 0.1
      %v636 = vmul.f32 %v583, 0.1
      %v637 = vmul.f32 %v586, 0.1
      %v638 = vmul.f32 %v588, 0.1
      %v639 = vmul.f32 %v591, 0.1
      %v640 = vmul.f32 %v593, 0.1
      %v641 = vmul.f32 %v596, 0.1
      %v642 = vmul.f32 %v598, 0.1
      %v643 = vmul.f32 %v601, 0.1
      %v644 = vmul.f32 %v603, 0.1
      %v645 = vsel %vm605, %v556, %v625
      %v646 = vsel %vm606, %v558, %v626
      %v647 = vsel %vm607, %v561, %v627
      %v648 = vsel %vm608, %v563, %v628
      %v649 = vsel %vm609, %v566, %v629
      %v650 = vsel %vm610, %v568, %v630
      %v651 = vsel %vm611, %v571, %v631
      %v652 = vsel %vm612, %v573, %v632
      %v653 = vsel %vm613, %v576, %v633
      %v654 = vsel %vm614, %v578, %v634
      %v655 = vsel %vm615, %v581, %v635
      %v656 = vsel %vm616, %v583, %v636
      %v657 = vsel %vm617, %v586, %v637
      %v658 = vsel %vm618, %v588, %v638
      %v659 = vsel %vm619, %v591, %v639
      %v660 = vsel %vm620, %v593, %v640
      %v661 = vsel %vm621, %v596, %v641
      %v662 = vsel %vm622, %v598, %v642
      %v663 = vsel %vm623, %v601, %v643
      %v664 = vsel %vm624, %v603, %v644
      %v665 = vlaneseq
      %v666 = vshrl.u32 %v665, 7
      %v667 = vadd.s32 %v666, 8
      %v668 = vadd.s32 %v666, 16
      %v669 = vadd.s32 %v666, 24
      %v670 = vadd.s32 %v666, 32
      %v671 = vadd.s32 %v666, 40
      %v672 = vadd.s32 %v666, 48
      %v673 = vadd.s32 %v666, 56
      %v674 = vadd.s32 %v666, 64
      %v675 = vadd.s32 %v666, 72
      %v676 = vadd.s32 %v666, 80
      %v677 = vadd.s32 %v666, 88
      %v678 = vadd.s32 %v666, 96
      %v679 = vadd.s32 %v666, 104
      %v680 = vadd.s32 %v666, 112
      %v681 = vadd.s32 %v666, 120
      %v682 = vadd.s32 %v666, 128
      %v683 = vadd.s32 %v666, 136
      %v684 = vadd.s32 %v666, 144
      %v685 = vadd.s32 %v666, 152
      %p686 = scmp.gt.s32.totalorder %s23, 0
      %vm687 = vcmp.ge.s32.totalorder %v666, 16
      %vm688 = vcmp.ge.s32.totalorder %v667, 16
      %vm689 = vcmp.ge.s32.totalorder %v668, 16
      %vm690 = vcmp.ge.s32.totalorder %v669, 16
      %vm691 = vcmp.ge.s32.totalorder %v670, 16
      %vm692 = vcmp.ge.s32.totalorder %v671, 16
      %vm693 = vcmp.ge.s32.totalorder %v672, 16
      %vm694 = vcmp.ge.s32.totalorder %v673, 16
      %vm695 = vcmp.ge.s32.totalorder %v674, 16
      %vm696 = vcmp.ge.s32.totalorder %v675, 16
      %vm697 = vcmp.ge.s32.totalorder %v676, 16
      %vm698 = vcmp.ge.s32.totalorder %v677, 16
      %vm699 = vcmp.ge.s32.totalorder %v678, 16
      %vm700 = vcmp.ge.s32.totalorder %v679, 16
      %vm701 = vcmp.ge.s32.totalorder %v680, 16
      %vm702 = vcmp.ge.s32.totalorder %v681, 16
      %vm703 = vcmp.ge.s32.totalorder %v682, 16
      %vm704 = vcmp.ge.s32.totalorder %v683, 16
      %vm705 = vcmp.ge.s32.totalorder %v684, 16
      %vm706 = vcmp.ge.s32.totalorder %v685, 16
      %s707 = scalar_select %p686, 1, 0
      %v708 = vstv %s707
      %vm709 = vcmp.eq.s32.totalorder %v708, 1
      %vm710 = vmor %vm709, %vm687
      %vm711 = vmor %vm709, %vm688
      %vm712 = vmor %vm709, %vm689
      %vm713 = vmor %vm709, %vm690
      %vm714 = vmor %vm709, %vm691
      %vm715 = vmor %vm709, %vm692
      %vm716 = vmor %vm709, %vm693
      %vm717 = vmor %vm709, %vm694
      %vm718 = vmor %vm709, %vm695
      %vm719 = vmor %vm709, %vm696
      %vm720 = vmor %vm709, %vm697
      %vm721 = vmor %vm709, %vm698
      %vm722 = vmor %vm709, %vm699
      %vm723 = vmor %vm709, %vm700
      %vm724 = vmor %vm709, %vm701
      %vm725 = vmor %vm709, %vm702
      %vm726 = vmor %vm709, %vm703
      %vm727 = vmor %vm709, %vm704
      %vm728 = vmor %vm709, %vm705
      %vm729 = vmor %vm709, %vm706
      %p730 = scmp.lt.s32.totalorder %s23, 1
      %vm731 = vcmp.lt.s32.totalorder %v666, 144
      %vm732 = vcmp.lt.s32.totalorder %v667, 144
      %vm733 = vcmp.lt.s32.totalorder %v668, 144
      %vm734 = vcmp.lt.s32.totalorder %v669, 144
      %vm735 = vcmp.lt.s32.totalorder %v670, 144
      %vm736 = vcmp.lt.s32.totalorder %v671, 144
      %vm737 = vcmp.lt.s32.totalorder %v672, 144
      %vm738 = vcmp.lt.s32.totalorder %v673, 144
      %vm739 = vcmp.lt.s32.totalorder %v674, 144
      %vm740 = vcmp.lt.s32.totalorder %v675, 144
      %vm741 = vcmp.lt.s32.totalorder %v676, 144
      %vm742 = vcmp.lt.s32.totalorder %v677, 144
      %vm743 = vcmp.lt.s32.totalorder %v678, 144
      %vm744 = vcmp.lt.s32.totalorder %v679, 144
      %vm745 = vcmp.lt.s32.totalorder %v680, 144
      %vm746 = vcmp.lt.s32.totalorder %v681, 144
      %vm747 = vcmp.lt.s32.totalorder %v682, 144
      %vm748 = vcmp.lt.s32.totalorder %v683, 144
      %vm749 = vcmp.lt.s32.totalorder %v684, 144
      %vm750 = vcmp.lt.s32.totalorder %v685, 144
      %s751 = scalar_select %p730, 1, 0
      %v752 = vstv %s751
      %vm753 = vcmp.eq.s32.totalorder %v752, 1
      %vm754 = vmor %vm753, %vm731
      %vm755 = vmor %vm753, %vm732
      %vm756 = vmor %vm753, %vm733
      %vm757 = vmor %vm753, %vm734
      %vm758 = vmor %vm753, %vm735
      %vm759 = vmor %vm753, %vm736
      %vm760 = vmor %vm753, %vm737
      %vm761 = vmor %vm753, %vm738
      %vm762 = vmor %vm753, %vm739
      %vm763 = vmor %vm753, %vm740
      %vm764 = vmor %vm753, %vm741
      %vm765 = vmor %vm753, %vm742
      %vm766 = vmor %vm753, %vm743
      %vm767 = vmor %vm753, %vm744
      %vm768 = vmor %vm753, %vm745
      %vm769 = vmor %vm753, %vm746
      %vm770 = vmor %vm753, %vm747
      %vm771 = vmor %vm753, %vm748
      %vm772 = vmor %vm753, %vm749
      %vm773 = vmor %vm753, %vm750
      %vm774 = vmand %vm710, %vm754
      %vm775 = vmand %vm711, %vm755
      %vm776 = vmand %vm712, %vm756
      %vm777 = vmand %vm713, %vm757
      %vm778 = vmand %vm714, %vm758
      %vm779 = vmand %vm715, %vm759
      %vm780 = vmand %vm716, %vm760
      %vm781 = vmand %vm717, %vm761
      %vm782 = vmand %vm718, %vm762
      %vm783 = vmand %vm719, %vm763
      %vm784 = vmand %vm720, %vm764
      %vm785 = vmand %vm721, %vm765
      %vm786 = vmand %vm722, %vm766
      %vm787 = vmand %vm723, %vm767
      %vm788 = vmand %vm724, %vm768
      %vm789 = vmand %vm725, %vm769
      %vm790 = vmand %vm726, %vm770
      %vm791 = vmand %vm727, %vm771
      %vm792 = vmand %vm728, %vm772
      %vm793 = vmand %vm729, %vm773
      %v794 = vsel %vm774, 1, 0
      %v795 = vsel %vm775, 1, 0
      %v796 = vsel %vm776, 1, 0
      %v797 = vsel %vm777, 1, 0
      %v798 = vsel %vm778, 1, 0
      %v799 = vsel %vm779, 1, 0
      %v800 = vsel %vm780, 1, 0
      %v801 = vsel %vm781, 1, 0
      %v802 = vsel %vm782, 1, 0
      %v803 = vsel %vm783, 1, 0
      %v804 = vsel %vm784, 1, 0
      %v805 = vsel %vm785, 1, 0
      %v806 = vsel %vm786, 1, 0
      %v807 = vsel %vm787, 1, 0
      %v808 = vsel %vm788, 1, 0
      %v809 = vsel %vm789, 1, 0
      %v810 = vsel %vm790, 1, 0
      %v811 = vsel %vm791, 1, 0
      %v812 = vsel %vm792, 1, 0
      %v813 = vsel %vm793, 1, 0
      %vm814 = vcmp.eq.s32.totalorder %v794, 1
      %vm815 = vcmp.eq.s32.totalorder %v795, 1
      %vm816 = vcmp.eq.s32.totalorder %v796, 1
      %vm817 = vcmp.eq.s32.totalorder %v797, 1
      %vm818 = vcmp.eq.s32.totalorder %v798, 1
      %vm819 = vcmp.eq.s32.totalorder %v799, 1
      %vm820 = vcmp.eq.s32.totalorder %v800, 1
      %vm821 = vcmp.eq.s32.totalorder %v801, 1
      %vm822 = vcmp.eq.s32.totalorder %v802, 1
      %vm823 = vcmp.eq.s32.totalorder %v803, 1
      %vm824 = vcmp.eq.s32.totalorder %v804, 1
      %vm825 = vcmp.eq.s32.totalorder %v805, 1
      %vm826 = vcmp.eq.s32.totalorder %v806, 1
      %vm827 = vcmp.eq.s32.totalorder %v807, 1
      %vm828 = vcmp.eq.s32.totalorder %v808, 1
      %vm829 = vcmp.eq.s32.totalorder %v809, 1
      %vm830 = vcmp.eq.s32.totalorder %v810, 1
      %vm831 = vcmp.eq.s32.totalorder %v811, 1
      %vm832 = vcmp.eq.s32.totalorder %v812, 1
      %vm833 = vcmp.eq.s32.totalorder %v813, 1
      %v834 = vsel %vm814, %v645, 0.0
      %v835 = vsel %vm815, %v646, 0.0
      %v836 = vsel %vm816, %v647, 0.0
      %v837 = vsel %vm817, %v648, 0.0
      %v838 = vsel %vm818, %v649, 0.0
      %v839 = vsel %vm819, %v650, 0.0
      %v840 = vsel %vm820, %v651, 0.0
      %v841 = vsel %vm821, %v652, 0.0
      %v842 = vsel %vm822, %v653, 0.0
      %v843 = vsel %vm823, %v654, 0.0
      %v844 = vsel %vm824, %v655, 0.0
      %v845 = vsel %vm825, %v656, 0.0
      %v846 = vsel %vm826, %v657, 0.0
      %v847 = vsel %vm827, %v658, 0.0
      %v848 = vsel %vm828, %v659, 0.0
      %v849 = vsel %vm829, %v660, 0.0
      %v850 = vsel %vm830, %v661, 0.0
      %v851 = vsel %vm831, %v662, 0.0
      %v852 = vsel %vm832, %v663, 0.0
      %v853 = vsel %vm833, %v664, 0.0
      %v854 = vpack.c.bf16 %v834, %v834
      %v855 = vpack.c.bf16 %v835, %v835
      %v856 = vpack.c.bf16 %v836, %v836
      %v857 = vpack.c.bf16 %v837, %v837
      %v858 = vpack.c.bf16 %v838, %v838
      %v859 = vpack.c.bf16 %v839, %v839
      %v860 = vpack.c.bf16 %v840, %v840
      %v861 = vpack.c.bf16 %v841, %v841
      %v862 = vpack.c.bf16 %v842, %v842
      %v863 = vpack.c.bf16 %v843, %v843
      %v864 = vpack.c.bf16 %v844, %v844
      %v865 = vpack.c.bf16 %v845, %v845
      %v866 = vpack.c.bf16 %v846, %v846
      %v867 = vpack.c.bf16 %v847, %v847
      %v868 = vpack.c.bf16 %v848, %v848
      %v869 = vpack.c.bf16 %v849, %v849
      %v870 = vpack.c.bf16 %v850, %v850
      %v871 = vpack.c.bf16 %v851, %v851
      %v872 = vpack.c.bf16 %v852, %v852
      %v873 = vpack.c.bf16 %v853, %v853
      %v894 = vunpack.c.l.b16 %v854
      %v895 = vunpack.c.l.b16 %v855
      %v896 = vunpack.c.l.b16 %v856
      %v897 = vunpack.c.l.b16 %v857
      %v898 = vunpack.c.l.b16 %v858
      %v899 = vunpack.c.l.b16 %v859
      %v900 = vunpack.c.l.b16 %v860
      %v901 = vunpack.c.l.b16 %v861
      %v902 = vunpack.c.l.b16 %v862
      %v903 = vunpack.c.l.b16 %v863
      %v904 = vunpack.c.l.b16 %v864
      %v905 = vunpack.c.l.b16 %v865
      %v906 = vunpack.c.l.b16 %v866
      %v907 = vunpack.c.l.b16 %v867
      %v908 = vunpack.c.l.b16 %v868
      %v909 = vunpack.c.l.b16 %v869
      %v910 = vunpack.c.l.b16 %v870
      %v911 = vunpack.c.l.b16 %v871
      %v912 = vunpack.c.l.b16 %v872
      %v913 = vunpack.c.l.b16 %v873
      %v914 = vpack.c.b16 %v895, %v894
      %v915 = vpack.c.b16 %v897, %v896
      %v916 = vpack.c.b16 %v899, %v898
      %v917 = vpack.c.b16 %v901, %v900
      %v918 = vpack.c.b16 %v903, %v902
      %v919 = vpack.c.b16 %v905, %v904
      %v920 = vpack.c.b16 %v907, %v906
      %v921 = vpack.c.b16 %v909, %v908
      %v922 = vpack.c.b16 %v911, %v910
      %v923 = vpack.c.b16 %v913, %v912
      %vm924 = vsmask.f32 256
      %v926 = vshrl.u32 %v914, 16
      %v928 = vrot.slane %v926, 7
      %v929 = vshll.u32 %v914, 16
      %v931 = vor.u32 %v928, %v929
      %v933 = vshrl.u32 %v915, 16
      %v935 = vrot.slane %v933, 7
      %v936 = vshll.u32 %v915, 16
      %v938 = vor.u32 %v935, %v936
      %v939 = vsel %vm924, %v928, %v938
      %v941 = vshrl.u32 %v916, 16
      %v943 = vrot.slane %v941, 7
      %v944 = vshll.u32 %v916, 16
      %v946 = vor.u32 %v943, %v944
      %v947 = vsel %vm924, %v935, %v946
      %v949 = vshrl.u32 %v917, 16
      %v951 = vrot.slane %v949, 7
      %v952 = vshll.u32 %v917, 16
      %v954 = vor.u32 %v951, %v952
      %v955 = vsel %vm924, %v943, %v954
      %v957 = vshrl.u32 %v918, 16
      %v959 = vrot.slane %v957, 7
      %v960 = vshll.u32 %v918, 16
      %v962 = vor.u32 %v959, %v960
      %v963 = vsel %vm924, %v951, %v962
      %v965 = vshrl.u32 %v919, 16
      %v967 = vrot.slane %v965, 7
      %v968 = vshll.u32 %v919, 16
      %v970 = vor.u32 %v967, %v968
      %v971 = vsel %vm924, %v959, %v970
      %v973 = vshrl.u32 %v920, 16
      %v975 = vrot.slane %v973, 7
      %v976 = vshll.u32 %v920, 16
      %v978 = vor.u32 %v975, %v976
      %v979 = vsel %vm924, %v967, %v978
      %v981 = vshrl.u32 %v921, 16
      %v983 = vrot.slane %v981, 7
      %v984 = vshll.u32 %v921, 16
      %v986 = vor.u32 %v983, %v984
      %v987 = vsel %vm924, %v975, %v986
      %v989 = vshrl.u32 %v922, 16
      %v991 = vrot.slane %v989, 7
      %v992 = vshll.u32 %v922, 16
      %v994 = vor.u32 %v991, %v992
      %v995 = vsel %vm924, %v983, %v994
      %v997 = vshrl.u32 %v923, 16
      %v999 = vrot.slane %v997, 7
      %v1000 = vshll.u32 %v923, 16
      %v1002 = vor.u32 %v999, %v1000
      %v1003 = vsel %vm924, %v991, %v1002
      %vm1015 = vcmask 1040384
      %vm1016 = vmand %vm1015, %vm924
      %v1017 = vsel %vm1016, 0, %v931
      %v1018 = vsel %vm1016, %v999, 0
      %vm1019 = vcmp.lt.s32.totalorder %v666, 0
      %v1020 = vsub.s32 0, %v666
      %v1021 = vsel %vm1019, %v1020, %v666
      %v1022 = vshrl.u32 %v1021, 4
      %v1023 = vand.u32 %v1021, 15
      %v1024 = vsub.s32 0, %v1023
      %v1025 = vsel %vm1019, %v1024, %v1023
      %vm1026 = vcmp.lt.s32.totalorder %v667, 0
      %v1027 = vsub.s32 0, %v667
      %v1028 = vsel %vm1026, %v1027, %v667
      %v1029 = vshrl.u32 %v1028, 4
      %v1030 = vand.u32 %v1028, 15
      %v1031 = vsub.s32 0, %v1030
      %v1032 = vsel %vm1026, %v1031, %v1030
      %vm1033 = vcmp.lt.s32.totalorder %v668, 0
      %v1034 = vsub.s32 0, %v668
      %v1035 = vsel %vm1033, %v1034, %v668
      %v1036 = vshrl.u32 %v1035, 4
      %v1037 = vand.u32 %v1035, 15
      %v1038 = vsub.s32 0, %v1037
      %v1039 = vsel %vm1033, %v1038, %v1037
      %vm1040 = vcmp.lt.s32.totalorder %v669, 0
      %v1041 = vsub.s32 0, %v669
      %v1042 = vsel %vm1040, %v1041, %v669
      %v1043 = vshrl.u32 %v1042, 4
      %v1044 = vand.u32 %v1042, 15
      %v1045 = vsub.s32 0, %v1044
      %v1046 = vsel %vm1040, %v1045, %v1044
      %vm1047 = vcmp.lt.s32.totalorder %v670, 0
      %v1048 = vsub.s32 0, %v670
      %v1049 = vsel %vm1047, %v1048, %v670
      %v1050 = vshrl.u32 %v1049, 4
      %v1051 = vand.u32 %v1049, 15
      %v1052 = vsub.s32 0, %v1051
      %v1053 = vsel %vm1047, %v1052, %v1051
      %vm1054 = vcmp.lt.s32.totalorder %v671, 0
      %v1055 = vsub.s32 0, %v671
      %v1056 = vsel %vm1054, %v1055, %v671
      %v1057 = vshrl.u32 %v1056, 4
      %v1058 = vand.u32 %v1056, 15
      %v1059 = vsub.s32 0, %v1058
      %v1060 = vsel %vm1054, %v1059, %v1058
      %vm1061 = vcmp.lt.s32.totalorder %v672, 0
      %v1062 = vsub.s32 0, %v672
      %v1063 = vsel %vm1061, %v1062, %v672
      %v1064 = vshrl.u32 %v1063, 4
      %v1065 = vand.u32 %v1063, 15
      %v1066 = vsub.s32 0, %v1065
      %v1067 = vsel %vm1061, %v1066, %v1065
      %vm1068 = vcmp.lt.s32.totalorder %v673, 0
      %v1069 = vsub.s32 0, %v673
      %v1070 = vsel %vm1068, %v1069, %v673
      %v1071 = vshrl.u32 %v1070, 4
      %v1072 = vand.u32 %v1070, 15
      %v1073 = vsub.s32 0, %v1072
      %v1074 = vsel %vm1068, %v1073, %v1072
      %vm1075 = vcmp.lt.s32.totalorder %v674, 0
      %v1076 = vsub.s32 0, %v674
      %v1077 = vsel %vm1075, %v1076, %v674
      %v1078 = vshrl.u32 %v1077, 4
      %v1079 = vand.u32 %v1077, 15
      %v1080 = vsub.s32 0, %v1079
      %v1081 = vsel %vm1075, %v1080, %v1079
      %vm1082 = vcmp.lt.s32.totalorder %v675, 0
      %v1083 = vsub.s32 0, %v675
      %v1084 = vsel %vm1082, %v1083, %v675
      %v1085 = vshrl.u32 %v1084, 4
      %v1086 = vand.u32 %v1084, 15
      %v1087 = vsub.s32 0, %v1086
      %v1088 = vsel %vm1082, %v1087, %v1086
      %vm1089 = vcmp.lt.s32.totalorder %v676, 0
      %v1090 = vsub.s32 0, %v676
      %v1091 = vsel %vm1089, %v1090, %v676
      %v1092 = vshrl.u32 %v1091, 4
      %v1093 = vand.u32 %v1091, 15
      %v1094 = vsub.s32 0, %v1093
      %v1095 = vsel %vm1089, %v1094, %v1093
      %vm1096 = vcmp.lt.s32.totalorder %v677, 0
      %v1097 = vsub.s32 0, %v677
      %v1098 = vsel %vm1096, %v1097, %v677
      %v1099 = vshrl.u32 %v1098, 4
      %v1100 = vand.u32 %v1098, 15
      %v1101 = vsub.s32 0, %v1100
      %v1102 = vsel %vm1096, %v1101, %v1100
      %vm1103 = vcmp.lt.s32.totalorder %v678, 0
      %v1104 = vsub.s32 0, %v678
      %v1105 = vsel %vm1103, %v1104, %v678
      %v1106 = vshrl.u32 %v1105, 4
      %v1107 = vand.u32 %v1105, 15
      %v1108 = vsub.s32 0, %v1107
      %v1109 = vsel %vm1103, %v1108, %v1107
      %vm1110 = vcmp.lt.s32.totalorder %v679, 0
      %v1111 = vsub.s32 0, %v679
      %v1112 = vsel %vm1110, %v1111, %v679
      %v1113 = vshrl.u32 %v1112, 4
      %v1114 = vand.u32 %v1112, 15
      %v1115 = vsub.s32 0, %v1114
      %v1116 = vsel %vm1110, %v1115, %v1114
      %vm1117 = vcmp.lt.s32.totalorder %v680, 0
      %v1118 = vsub.s32 0, %v680
      %v1119 = vsel %vm1117, %v1118, %v680
      %v1120 = vshrl.u32 %v1119, 4
      %v1121 = vand.u32 %v1119, 15
      %v1122 = vsub.s32 0, %v1121
      %v1123 = vsel %vm1117, %v1122, %v1121
      %vm1124 = vcmp.lt.s32.totalorder %v681, 0
      %v1125 = vsub.s32 0, %v681
      %v1126 = vsel %vm1124, %v1125, %v681
      %v1127 = vshrl.u32 %v1126, 4
      %v1128 = vand.u32 %v1126, 15
      %v1129 = vsub.s32 0, %v1128
      %v1130 = vsel %vm1124, %v1129, %v1128
      %vm1131 = vcmp.ne.s32.totalorder %v1025, 0
      %vm1132 = vcmp.ne.s32.totalorder %v1032, 0
      %vm1133 = vcmp.ne.s32.totalorder %v1039, 0
      %vm1134 = vcmp.ne.s32.totalorder %v1046, 0
      %vm1135 = vcmp.ne.s32.totalorder %v1053, 0
      %vm1136 = vcmp.ne.s32.totalorder %v1060, 0
      %vm1137 = vcmp.ne.s32.totalorder %v1067, 0
      %vm1138 = vcmp.ne.s32.totalorder %v1074, 0
      %vm1139 = vcmp.ne.s32.totalorder %v1081, 0
      %vm1140 = vcmp.ne.s32.totalorder %v1088, 0
      %vm1141 = vcmp.ne.s32.totalorder %v1095, 0
      %vm1142 = vcmp.ne.s32.totalorder %v1102, 0
      %vm1143 = vcmp.ne.s32.totalorder %v1109, 0
      %vm1144 = vcmp.ne.s32.totalorder %v1116, 0
      %vm1145 = vcmp.ne.s32.totalorder %v1123, 0
      %vm1146 = vcmp.ne.s32.totalorder %v1130, 0
      %vm1147 = vcmp.lt.s32.totalorder %v1025, 0
      %vm1148 = vcmp.lt.s32.totalorder %v1032, 0
      %vm1149 = vcmp.lt.s32.totalorder %v1039, 0
      %vm1150 = vcmp.lt.s32.totalorder %v1046, 0
      %vm1151 = vcmp.lt.s32.totalorder %v1053, 0
      %vm1152 = vcmp.lt.s32.totalorder %v1060, 0
      %vm1153 = vcmp.lt.s32.totalorder %v1067, 0
      %vm1154 = vcmp.lt.s32.totalorder %v1074, 0
      %vm1155 = vcmp.lt.s32.totalorder %v1081, 0
      %vm1156 = vcmp.lt.s32.totalorder %v1088, 0
      %vm1157 = vcmp.lt.s32.totalorder %v1095, 0
      %vm1158 = vcmp.lt.s32.totalorder %v1102, 0
      %vm1159 = vcmp.lt.s32.totalorder %v1109, 0
      %vm1160 = vcmp.lt.s32.totalorder %v1116, 0
      %vm1161 = vcmp.lt.s32.totalorder %v1123, 0
      %vm1162 = vcmp.lt.s32.totalorder %v1130, 0
      %vm1163 = vmand %vm1147, %vm1131
      %vm1164 = vmand %vm1148, %vm1132
      %vm1165 = vmand %vm1149, %vm1133
      %vm1166 = vmand %vm1150, %vm1134
      %vm1167 = vmand %vm1151, %vm1135
      %vm1168 = vmand %vm1152, %vm1136
      %vm1169 = vmand %vm1153, %vm1137
      %vm1170 = vmand %vm1154, %vm1138
      %vm1171 = vmand %vm1155, %vm1139
      %vm1172 = vmand %vm1156, %vm1140
      %vm1173 = vmand %vm1157, %vm1141
      %vm1174 = vmand %vm1158, %vm1142
      %vm1175 = vmand %vm1159, %vm1143
      %vm1176 = vmand %vm1160, %vm1144
      %vm1177 = vmand %vm1161, %vm1145
      %vm1178 = vmand %vm1162, %vm1146
      %v1179 = vadd.s32 %v1025, 16
      %v1180 = vadd.s32 %v1032, 16
      %v1181 = vadd.s32 %v1039, 16
      %v1182 = vadd.s32 %v1046, 16
      %v1183 = vadd.s32 %v1053, 16
      %v1184 = vadd.s32 %v1060, 16
      %v1185 = vadd.s32 %v1067, 16
      %v1186 = vadd.s32 %v1074, 16
      %v1187 = vadd.s32 %v1081, 16
      %v1188 = vadd.s32 %v1088, 16
      %v1189 = vadd.s32 %v1095, 16
      %v1190 = vadd.s32 %v1102, 16
      %v1191 = vadd.s32 %v1109, 16
      %v1192 = vadd.s32 %v1116, 16
      %v1193 = vadd.s32 %v1123, 16
      %v1194 = vadd.s32 %v1130, 16
      %v1195 = vsel %vm1163, %v1179, %v1025
      %v1196 = vsel %vm1164, %v1180, %v1032
      %v1197 = vsel %vm1165, %v1181, %v1039
      %v1198 = vsel %vm1166, %v1182, %v1046
      %v1199 = vsel %vm1167, %v1183, %v1053
      %v1200 = vsel %vm1168, %v1184, %v1060
      %v1201 = vsel %vm1169, %v1185, %v1067
      %v1202 = vsel %vm1170, %v1186, %v1074
      %v1203 = vsel %vm1171, %v1187, %v1081
      %v1204 = vsel %vm1172, %v1188, %v1088
      %v1205 = vsel %vm1173, %v1189, %v1095
      %v1206 = vsel %vm1174, %v1190, %v1102
      %v1207 = vsel %vm1175, %v1191, %v1109
      %v1208 = vsel %vm1176, %v1192, %v1116
      %v1209 = vsel %vm1177, %v1193, %v1123
      %v1210 = vsel %vm1178, %v1194, %v1130
      %vm1211 = vcmp.ge.s32.totalorder %v1195, 1
      %vm1212 = vcmp.ge.s32.totalorder %v1196, 1
      %vm1213 = vcmp.ge.s32.totalorder %v1197, 1
      %vm1214 = vcmp.ge.s32.totalorder %v1198, 1
      %vm1215 = vcmp.ge.s32.totalorder %v1199, 1
      %vm1216 = vcmp.ge.s32.totalorder %v1200, 1
      %vm1217 = vcmp.ge.s32.totalorder %v1201, 1
      %vm1218 = vcmp.ge.s32.totalorder %v1202, 1
      %vm1219 = vcmp.ge.s32.totalorder %v1203, 1
      %vm1220 = vcmp.ge.s32.totalorder %v1204, 1
      %vm1221 = vcmp.ge.s32.totalorder %v1205, 1
      %vm1222 = vcmp.ge.s32.totalorder %v1206, 1
      %vm1223 = vcmp.ge.s32.totalorder %v1207, 1
      %vm1224 = vcmp.ge.s32.totalorder %v1208, 1
      %vm1225 = vcmp.ge.s32.totalorder %v1209, 1
      %vm1226 = vcmp.ge.s32.totalorder %v1210, 1
      %vm1227 = vcmp.le.s32.totalorder %v1195, 14
      %vm1228 = vcmp.le.s32.totalorder %v1196, 14
      %vm1229 = vcmp.le.s32.totalorder %v1197, 14
      %vm1230 = vcmp.le.s32.totalorder %v1198, 14
      %vm1231 = vcmp.le.s32.totalorder %v1199, 14
      %vm1232 = vcmp.le.s32.totalorder %v1200, 14
      %vm1233 = vcmp.le.s32.totalorder %v1201, 14
      %vm1234 = vcmp.le.s32.totalorder %v1202, 14
      %vm1235 = vcmp.le.s32.totalorder %v1203, 14
      %vm1236 = vcmp.le.s32.totalorder %v1204, 14
      %vm1237 = vcmp.le.s32.totalorder %v1205, 14
      %vm1238 = vcmp.le.s32.totalorder %v1206, 14
      %vm1239 = vcmp.le.s32.totalorder %v1207, 14
      %vm1240 = vcmp.le.s32.totalorder %v1208, 14
      %vm1241 = vcmp.le.s32.totalorder %v1209, 14
      %vm1242 = vcmp.le.s32.totalorder %v1210, 14
      %v1243 = vsel %vm1211, 1, 0
      %v1244 = vsel %vm1212, 1, 0
      %v1245 = vsel %vm1213, 1, 0
      %v1246 = vsel %vm1214, 1, 0
      %v1247 = vsel %vm1215, 1, 0
      %v1248 = vsel %vm1216, 1, 0
      %v1249 = vsel %vm1217, 1, 0
      %v1250 = vsel %vm1218, 1, 0
      %v1251 = vsel %vm1219, 1, 0
      %v1252 = vsel %vm1220, 1, 0
      %v1253 = vsel %vm1221, 1, 0
      %v1254 = vsel %vm1222, 1, 0
      %v1255 = vsel %vm1223, 1, 0
      %v1256 = vsel %vm1224, 1, 0
      %v1257 = vsel %vm1225, 1, 0
      %v1258 = vsel %vm1226, 1, 0
      %vm1259 = vcmp.eq.s32.totalorder %v1243, 1
      %vm1260 = vcmp.eq.s32.totalorder %v1244, 1
      %vm1261 = vcmp.eq.s32.totalorder %v1245, 1
      %vm1262 = vcmp.eq.s32.totalorder %v1246, 1
      %vm1263 = vcmp.eq.s32.totalorder %v1247, 1
      %vm1264 = vcmp.eq.s32.totalorder %v1248, 1
      %vm1265 = vcmp.eq.s32.totalorder %v1249, 1
      %vm1266 = vcmp.eq.s32.totalorder %v1250, 1
      %vm1267 = vcmp.eq.s32.totalorder %v1251, 1
      %vm1268 = vcmp.eq.s32.totalorder %v1252, 1
      %vm1269 = vcmp.eq.s32.totalorder %v1253, 1
      %vm1270 = vcmp.eq.s32.totalorder %v1254, 1
      %vm1271 = vcmp.eq.s32.totalorder %v1255, 1
      %vm1272 = vcmp.eq.s32.totalorder %v1256, 1
      %vm1273 = vcmp.eq.s32.totalorder %v1257, 1
      %vm1274 = vcmp.eq.s32.totalorder %v1258, 1
      %vm1275 = vmpackc.low %vm1259, %vm1259
      %vm1276 = vmpackc.low %vm1260, %vm1260
      %vm1277 = vmpackc.low %vm1261, %vm1261
      %vm1278 = vmpackc.low %vm1262, %vm1262
      %vm1279 = vmpackc.low %vm1263, %vm1263
      %vm1280 = vmpackc.low %vm1264, %vm1264
      %vm1281 = vmpackc.low %vm1265, %vm1265
      %vm1282 = vmpackc.low %vm1266, %vm1266
      %vm1283 = vmpackc.low %vm1267, %vm1267
      %vm1284 = vmpackc.low %vm1268, %vm1268
      %vm1285 = vmpackc.low %vm1269, %vm1269
      %vm1286 = vmpackc.low %vm1270, %vm1270
      %vm1287 = vmpackc.low %vm1271, %vm1271
      %vm1288 = vmpackc.low %vm1272, %vm1272
      %vm1289 = vmpackc.low %vm1273, %vm1273
      %vm1290 = vmpackc.low %vm1274, %vm1274
      %v1291 = vsel %vm1275, 65537, 0
      %v1292 = vsel %vm1276, 65537, 0
      %v1293 = vsel %vm1277, 65537, 0
      %v1294 = vsel %vm1278, 65537, 0
      %v1295 = vsel %vm1279, 65537, 0
      %v1296 = vsel %vm1280, 65537, 0
      %v1297 = vsel %vm1281, 65537, 0
      %v1298 = vsel %vm1282, 65537, 0
      %v1299 = vsel %vm1283, 65537, 0
      %v1300 = vsel %vm1284, 65537, 0
      %v1301 = vsel %vm1285, 65537, 0
      %v1302 = vsel %vm1286, 65537, 0
      %v1303 = vsel %vm1287, 65537, 0
      %v1304 = vsel %vm1288, 65537, 0
      %v1305 = vsel %vm1289, 65537, 0
      %v1306 = vsel %vm1290, 65537, 0
      %v1307 = vunpack.c.l.b16 %v1291
      %v1308 = vunpack.c.l.b16 %v1292
      %v1309 = vunpack.c.l.b16 %v1293
      %v1310 = vunpack.c.l.b16 %v1294
      %v1311 = vunpack.c.l.b16 %v1295
      %v1312 = vunpack.c.l.b16 %v1296
      %v1313 = vunpack.c.l.b16 %v1297
      %v1314 = vunpack.c.l.b16 %v1298
      %v1315 = vunpack.c.l.b16 %v1299
      %v1316 = vunpack.c.l.b16 %v1300
      %v1317 = vunpack.c.l.b16 %v1301
      %v1318 = vunpack.c.l.b16 %v1302
      %v1319 = vunpack.c.l.b16 %v1303
      %v1320 = vunpack.c.l.b16 %v1304
      %v1321 = vunpack.c.l.b16 %v1305
      %v1322 = vunpack.c.l.b16 %v1306
      %v1323 = vpack.c.b16 %v1308, %v1307
      %v1324 = vpack.c.b16 %v1310, %v1309
      %v1325 = vpack.c.b16 %v1312, %v1311
      %v1326 = vpack.c.b16 %v1314, %v1313
      %v1327 = vpack.c.b16 %v1316, %v1315
      %v1328 = vpack.c.b16 %v1318, %v1317
      %v1329 = vpack.c.b16 %v1320, %v1319
      %v1330 = vpack.c.b16 %v1322, %v1321
      %v1331 = vunpack.c.l.b16 %v1323
      %v1332 = vunpack.c.h.b16 %v1323
      %v1333 = vunpack.c.l.b16 0
      %v1334 = vunpack.c.h.b16 0
      %vm1335 = vcmp.ne.s32.totalorder %v1331, %v1333
      %vm1336 = vcmp.ne.s32.totalorder %v1332, %v1334
      %vm1337 = vmpackc.low %vm1336, %vm1335
      %v1338 = vunpack.c.l.b16 %v1324
      %v1339 = vunpack.c.h.b16 %v1324
      %v1340 = vunpack.c.l.b16 0
      %v1341 = vunpack.c.h.b16 0
      %vm1342 = vcmp.ne.s32.totalorder %v1338, %v1340
      %vm1343 = vcmp.ne.s32.totalorder %v1339, %v1341
      %vm1344 = vmpackc.low %vm1343, %vm1342
      %v1345 = vunpack.c.l.b16 %v1325
      %v1346 = vunpack.c.h.b16 %v1325
      %v1347 = vunpack.c.l.b16 0
      %v1348 = vunpack.c.h.b16 0
      %vm1349 = vcmp.ne.s32.totalorder %v1345, %v1347
      %vm1350 = vcmp.ne.s32.totalorder %v1346, %v1348
      %vm1351 = vmpackc.low %vm1350, %vm1349
      %v1352 = vunpack.c.l.b16 %v1326
      %v1353 = vunpack.c.h.b16 %v1326
      %v1354 = vunpack.c.l.b16 0
      %v1355 = vunpack.c.h.b16 0
      %vm1356 = vcmp.ne.s32.totalorder %v1352, %v1354
      %vm1357 = vcmp.ne.s32.totalorder %v1353, %v1355
      %vm1358 = vmpackc.low %vm1357, %vm1356
      %v1359 = vunpack.c.l.b16 %v1327
      %v1360 = vunpack.c.h.b16 %v1327
      %v1361 = vunpack.c.l.b16 0
      %v1362 = vunpack.c.h.b16 0
      %vm1363 = vcmp.ne.s32.totalorder %v1359, %v1361
      %vm1364 = vcmp.ne.s32.totalorder %v1360, %v1362
      %vm1365 = vmpackc.low %vm1364, %vm1363
      %v1366 = vunpack.c.l.b16 %v1328
      %v1367 = vunpack.c.h.b16 %v1328
      %v1368 = vunpack.c.l.b16 0
      %v1369 = vunpack.c.h.b16 0
      %vm1370 = vcmp.ne.s32.totalorder %v1366, %v1368
      %vm1371 = vcmp.ne.s32.totalorder %v1367, %v1369
      %vm1372 = vmpackc.low %vm1371, %vm1370
      %v1373 = vunpack.c.l.b16 %v1329
      %v1374 = vunpack.c.h.b16 %v1329
      %v1375 = vunpack.c.l.b16 0
      %v1376 = vunpack.c.h.b16 0
      %vm1377 = vcmp.ne.s32.totalorder %v1373, %v1375
      %vm1378 = vcmp.ne.s32.totalorder %v1374, %v1376
      %vm1379 = vmpackc.low %vm1378, %vm1377
      %v1380 = vunpack.c.l.b16 %v1330
      %v1381 = vunpack.c.h.b16 %v1330
      %v1382 = vunpack.c.l.b16 0
      %v1383 = vunpack.c.h.b16 0
      %vm1384 = vcmp.ne.s32.totalorder %v1380, %v1382
      %vm1385 = vcmp.ne.s32.totalorder %v1381, %v1383
      %vm1386 = vmpackc.low %vm1385, %vm1384
      %v1387 = vsel %vm1337, %v1017, 0
      %v1388 = vsel %vm1344, %v939, 0
      %v1389 = vsel %vm1351, %v947, 0
      %v1390 = vsel %vm1358, %v955, 0
      %v1391 = vsel %vm1365, %v963, 0
      %v1392 = vsel %vm1372, %v971, 0
      %v1393 = vsel %vm1379, %v979, 0
      %v1394 = vsel %vm1386, %v987, 0
      %v1395 = vld [vmem:[%s5] sm:$0xf]
      %v1396 = vld [vmem:[%s5 + $0x4] sm:$0xf]
      %v1397 = vld [vmem:[%s5 + $0x8] sm:$0xf]
      %v1398 = vld [vmem:[%s5 + $0xc] sm:$0xf]
      %v1399 = vld [vmem:[%s5 + $0x10] sm:$0xf]
      %v1400 = vld [vmem:[%s5 + $0x14] sm:$0xf]
      %v1401 = vld [vmem:[%s5 + $0x18] sm:$0xf]
      %v1402 = vld [vmem:[%s5 + $0x1c] sm:$0xf]
      %vm1403 = vsmask.f32 7424
      %v1405 = vshrl.u32 %v1017, 16
      %v1407 = vshll.u32 %v1017, 16
      %v1409 = vrot.slane %v1407, 1
      %v1410 = vor.u32 %v1405, %v1409
      %v1412 = vshll.u32 %v939, 16
      %v1414 = vrot.slane %v1412, 1
      %v1415 = vsel %vm1403, %v1410, %v1414
      %v1416 = vshrl.u32 %v939, 16
      %v1418 = vor.u32 %v1416, %v1414
      %v1420 = vshll.u32 %v947, 16
      %v1422 = vrot.slane %v1420, 1
      %v1423 = vsel %vm1403, %v1418, %v1422
      %v1424 = vshrl.u32 %v947, 16
      %v1426 = vor.u32 %v1424, %v1422
      %v1428 = vshll.u32 %v955, 16
      %v1430 = vrot.slane %v1428, 1
      %v1431 = vsel %vm1403, %v1426, %v1430
      %v1432 = vshrl.u32 %v955, 16
      %v1434 = vor.u32 %v1432, %v1430
      %v1436 = vshll.u32 %v963, 16
      %v1438 = vrot.slane %v1436, 1
      %v1439 = vsel %vm1403, %v1434, %v1438
      %v1440 = vshrl.u32 %v963, 16
      %v1442 = vor.u32 %v1440, %v1438
      %v1444 = vshll.u32 %v971, 16
      %v1446 = vrot.slane %v1444, 1
      %v1447 = vsel %vm1403, %v1442, %v1446
      %v1448 = vshrl.u32 %v971, 16
      %v1450 = vor.u32 %v1448, %v1446
      %v1452 = vshll.u32 %v979, 16
      %v1454 = vrot.slane %v1452, 1
      %v1455 = vsel %vm1403, %v1450, %v1454
      %v1456 = vshrl.u32 %v979, 16
      %v1458 = vor.u32 %v1456, %v1454
      %v1460 = vshll.u32 %v987, 16
      %v1462 = vrot.slane %v1460, 1
      %v1463 = vsel %vm1403, %v1458, %v1462
      %v1464 = vshrl.u32 %v987, 16
      %v1466 = vor.u32 %v1464, %v1462
      %v1468 = vshll.u32 %v995, 16
      %v1470 = vrot.slane %v1468, 1
      %v1471 = vsel %vm1403, %v1466, %v1470
      %v1476 = vunpack.c.l.b16 %v1399
      %v1477 = vunpack.c.l.b16 %v1400
      %v1478 = vunpack.c.l.b16 %v1401
      %v1479 = vunpack.c.l.b16 %v1402
      %v1480 = vpack.c.b16 %v1477, %v1476
      %v1481 = vpack.c.b16 %v1479, %v1478
      %vm1484 = vcmask 261120
      %v1486 = vsel %vm1484, %v1415, 0
      %v1489 = vsel %vm1484, %v1423, 0
      %v1492 = vsel %vm1484, %v1431, 0
      %v1495 = vsel %vm1484, %v1439, 0
      %v1498 = vsel %vm1484, %v1447, 0
      %v1501 = vsel %vm1484, %v1455, 0
      %v1504 = vsel %vm1484, %v1463, 0
      %v1507 = vsel %vm1484, %v1471, 0
      %1509 = vmatpush.bf16.msra.mxu0 0
      %1510 = vmatpush.bf16.msra.mxu0 0
      %1511 = vmatpush.bf16.msra.mxu0 0
      %1512 = vmatpush.bf16.msra.mxu0 0
      %1513 = vmatpush.bf16.msra.mxu0 0
      %1514 = vmatpush.bf16.msra.mxu0 0
      %1515 = vmatpush.bf16.msra.mxu0 %v1481
      %1516 = vmatpush.bf16.msra.mxu0 %v1480
      %1517 = vmatmul.bf16.gmra.mxu0 %v1486
      %v1518 = vpop.f32.mrf.mxu0
      %v1519 = vadd.f32 0.0, %v1518
      %v1520 = vpop.f32.mrf.mxu0
      %v1521 = vadd.f32 0.0, %v1520
      %1522 = vmatmul.bf16.gmra.mxu0 %v1489
      %v1523 = vpop.f32.mrf.mxu0
      %v1524 = vadd.f32 0.0, %v1523
      %v1525 = vpop.f32.mrf.mxu0
      %v1526 = vadd.f32 0.0, %v1525
      %1527 = vmatmul.bf16.gmra.mxu0 %v1492
      %v1528 = vpop.f32.mrf.mxu0
      %v1529 = vadd.f32 0.0, %v1528
      %v1530 = vpop.f32.mrf.mxu0
      %v1531 = vadd.f32 0.0, %v1530
      %1532 = vmatmul.bf16.gmra.mxu0 %v1495
      %v1533 = vpop.f32.mrf.mxu0
      %v1534 = vadd.f32 0.0, %v1533
      %v1535 = vpop.f32.mrf.mxu0
      %v1536 = vadd.f32 0.0, %v1535
      %1537 = vmatmul.bf16.gmra.mxu0 %v1498
      %v1538 = vpop.f32.mrf.mxu0
      %v1539 = vadd.f32 0.0, %v1538
      %v1540 = vpop.f32.mrf.mxu0
      %v1541 = vadd.f32 0.0, %v1540
      %1542 = vmatmul.bf16.gmra.mxu0 %v1501
      %v1543 = vpop.f32.mrf.mxu0
      %v1544 = vadd.f32 0.0, %v1543
      %v1545 = vpop.f32.mrf.mxu0
      %v1546 = vadd.f32 0.0, %v1545
      %1547 = vmatmul.bf16.gmra.mxu0 %v1504
      %v1548 = vpop.f32.mrf.mxu0
      %v1549 = vadd.f32 0.0, %v1548
      %v1550 = vpop.f32.mrf.mxu0
      %v1551 = vadd.f32 0.0, %v1550
      %1552 = vmatmul.bf16.gmra.mxu0 %v1507
      %v1553 = vpop.f32.mrf.mxu0
      %v1554 = vadd.f32 0.0, %v1553
      %v1555 = vpop.f32.mrf.mxu0
      %v1556 = vadd.f32 0.0, %v1555
      %1557 = vdwg.mxu0
      %v1562 = vunpack.c.l.b16 %v1395
      %v1563 = vunpack.c.l.b16 %v1396
      %v1564 = vunpack.c.l.b16 %v1397
      %v1565 = vunpack.c.l.b16 %v1398
      %v1566 = vpack.c.b16 %v1563, %v1562
      %v1567 = vpack.c.b16 %v1565, %v1564
      %v1571 = vsel %vm1484, %v1387, 0
      %v1574 = vsel %vm1484, %v1388, 0
      %v1577 = vsel %vm1484, %v1389, 0
      %v1580 = vsel %vm1484, %v1390, 0
      %v1583 = vsel %vm1484, %v1391, 0
      %v1586 = vsel %vm1484, %v1392, 0
      %v1589 = vsel %vm1484, %v1393, 0
      %v1592 = vsel %vm1484, %v1394, 0
      %1594 = vmatpush.bf16.msra.mxu0 0
      %1595 = vmatpush.bf16.msra.mxu0 0
      %1596 = vmatpush.bf16.msra.mxu0 0
      %1597 = vmatpush.bf16.msra.mxu0 0
      %1598 = vmatpush.bf16.msra.mxu0 0
      %1599 = vmatpush.bf16.msra.mxu0 0
      %1600 = vmatpush.bf16.msra.mxu0 %v1567
      %1601 = vmatpush.bf16.msra.mxu0 %v1566
      %1602 = vmatmul.bf16.gmra.mxu0 %v1571
      %v1603 = vpop.f32.mrf.mxu0
      %v1604 = vadd.f32 %v1519, %v1603
      %v1605 = vpop.f32.mrf.mxu0
      %v1606 = vadd.f32 %v1521, %v1605
      %1607 = vmatmul.bf16.gmra.mxu0 %v1574
      %v1608 = vpop.f32.mrf.mxu0
      %v1609 = vadd.f32 %v1524, %v1608
      %v1610 = vpop.f32.mrf.mxu0
      %v1611 = vadd.f32 %v1526, %v1610
      %1612 = vmatmul.bf16.gmra.mxu0 %v1577
      %v1613 = vpop.f32.mrf.mxu0
      %v1614 = vadd.f32 %v1529, %v1613
      %v1615 = vpop.f32.mrf.mxu0
      %v1616 = vadd.f32 %v1531, %v1615
      %1617 = vmatmul.bf16.gmra.mxu0 %v1580
      %v1618 = vpop.f32.mrf.mxu0
      %v1619 = vadd.f32 %v1534, %v1618
      %v1620 = vpop.f32.mrf.mxu0
      %v1621 = vadd.f32 %v1536, %v1620
      %1622 = vmatmul.bf16.gmra.mxu0 %v1583
      %v1623 = vpop.f32.mrf.mxu0
      %v1624 = vadd.f32 %v1539, %v1623
      %v1625 = vpop.f32.mrf.mxu0
      %v1626 = vadd.f32 %v1541, %v1625
      %1627 = vmatmul.bf16.gmra.mxu0 %v1586
      %v1628 = vpop.f32.mrf.mxu0
      %v1629 = vadd.f32 %v1544, %v1628
      %v1630 = vpop.f32.mrf.mxu0
      %v1631 = vadd.f32 %v1546, %v1630
      %1632 = vmatmul.bf16.gmra.mxu0 %v1589
      %v1633 = vpop.f32.mrf.mxu0
      %v1634 = vadd.f32 %v1549, %v1633
      %v1635 = vpop.f32.mrf.mxu0
      %v1636 = vadd.f32 %v1551, %v1635
      %1637 = vmatmul.bf16.gmra.mxu0 %v1592
      %v1638 = vpop.f32.mrf.mxu0
      %v1639 = vadd.f32 %v1554, %v1638
      %v1640 = vpop.f32.mrf.mxu0
      %v1641 = vadd.f32 %v1556, %v1640
      %1642 = vdwg.mxu0
      %v1643 = vsel %vm1227, 1, 0
      %v1644 = vsel %vm1228, 1, 0
      %v1645 = vsel %vm1229, 1, 0
      %v1646 = vsel %vm1230, 1, 0
      %v1647 = vsel %vm1231, 1, 0
      %v1648 = vsel %vm1232, 1, 0
      %v1649 = vsel %vm1233, 1, 0
      %v1650 = vsel %vm1234, 1, 0
      %v1651 = vsel %vm1235, 1, 0
      %v1652 = vsel %vm1236, 1, 0
      %v1653 = vsel %vm1237, 1, 0
      %v1654 = vsel %vm1238, 1, 0
      %v1655 = vsel %vm1239, 1, 0
      %v1656 = vsel %vm1240, 1, 0
      %v1657 = vsel %vm1241, 1, 0
      %v1658 = vsel %vm1242, 1, 0
      %vm1659 = vcmp.eq.s32.totalorder %v1643, 1
      %vm1660 = vcmp.eq.s32.totalorder %v1644, 1
      %vm1661 = vcmp.eq.s32.totalorder %v1645, 1
      %vm1662 = vcmp.eq.s32.totalorder %v1646, 1
      %vm1663 = vcmp.eq.s32.totalorder %v1647, 1
      %vm1664 = vcmp.eq.s32.totalorder %v1648, 1
      %vm1665 = vcmp.eq.s32.totalorder %v1649, 1
      %vm1666 = vcmp.eq.s32.totalorder %v1650, 1
      %vm1667 = vcmp.eq.s32.totalorder %v1651, 1
      %vm1668 = vcmp.eq.s32.totalorder %v1652, 1
      %vm1669 = vcmp.eq.s32.totalorder %v1653, 1
      %vm1670 = vcmp.eq.s32.totalorder %v1654, 1
      %vm1671 = vcmp.eq.s32.totalorder %v1655, 1
      %vm1672 = vcmp.eq.s32.totalorder %v1656, 1
      %vm1673 = vcmp.eq.s32.totalorder %v1657, 1
      %vm1674 = vcmp.eq.s32.totalorder %v1658, 1
      %vm1675 = vmpackc.low %vm1659, %vm1659
      %vm1676 = vmpackc.low %vm1660, %vm1660
      %vm1677 = vmpackc.low %vm1661, %vm1661
      %vm1678 = vmpackc.low %vm1662, %vm1662
      %vm1679 = vmpackc.low %vm1663, %vm1663
      %vm1680 = vmpackc.low %vm1664, %vm1664
      %vm1681 = vmpackc.low %vm1665, %vm1665
      %vm1682 = vmpackc.low %vm1666, %vm1666
      %vm1683 = vmpackc.low %vm1667, %vm1667
      %vm1684 = vmpackc.low %vm1668, %vm1668
      %vm1685 = vmpackc.low %vm1669, %vm1669
      %vm1686 = vmpackc.low %vm1670, %vm1670
      %vm1687 = vmpackc.low %vm1671, %vm1671
      %vm1688 = vmpackc.low %vm1672, %vm1672
      %vm1689 = vmpackc.low %vm1673, %vm1673
      %vm1690 = vmpackc.low %vm1674, %vm1674
      %v1691 = vsel %vm1675, 65537, 0
      %v1692 = vsel %vm1676, 65537, 0
      %v1693 = vsel %vm1677, 65537, 0
      %v1694 = vsel %vm1678, 65537, 0
      %v1695 = vsel %vm1679, 65537, 0
      %v1696 = vsel %vm1680, 65537, 0
      %v1697 = vsel %vm1681, 65537, 0
      %v1698 = vsel %vm1682, 65537, 0
      %v1699 = vsel %vm1683, 65537, 0
      %v1700 = vsel %vm1684, 65537, 0
      %v1701 = vsel %vm1685, 65537, 0
      %v1702 = vsel %vm1686, 65537, 0
      %v1703 = vsel %vm1687, 65537, 0
      %v1704 = vsel %vm1688, 65537, 0
      %v1705 = vsel %vm1689, 65537, 0
      %v1706 = vsel %vm1690, 65537, 0
      %v1707 = vunpack.c.l.b16 %v1691
      %v1708 = vunpack.c.l.b16 %v1692
      %v1709 = vunpack.c.l.b16 %v1693
      %v1710 = vunpack.c.l.b16 %v1694
      %v1711 = vunpack.c.l.b16 %v1695
      %v1712 = vunpack.c.l.b16 %v1696
      %v1713 = vunpack.c.l.b16 %v1697
      %v1714 = vunpack.c.l.b16 %v1698
      %v1715 = vunpack.c.l.b16 %v1699
      %v1716 = vunpack.c.l.b16 %v1700
      %v1717 = vunpack.c.l.b16 %v1701
      %v1718 = vunpack.c.l.b16 %v1702
      %v1719 = vunpack.c.l.b16 %v1703
      %v1720 = vunpack.c.l.b16 %v1704
      %v1721 = vunpack.c.l.b16 %v1705
      %v1722 = vunpack.c.l.b16 %v1706
      %v1723 = vpack.c.b16 %v1708, %v1707
      %v1724 = vpack.c.b16 %v1710, %v1709
      %v1725 = vpack.c.b16 %v1712, %v1711
      %v1726 = vpack.c.b16 %v1714, %v1713
      %v1727 = vpack.c.b16 %v1716, %v1715
      %v1728 = vpack.c.b16 %v1718, %v1717
      %v1729 = vpack.c.b16 %v1720, %v1719
      %v1730 = vpack.c.b16 %v1722, %v1721
      %v1731 = vrot.slane %v1723, 7
      %v1732 = vrot.slane %v1724, 7
      %v1733 = vsel %vm1015, %v1731, %v1732
      %v1734 = vrot.slane %v1725, 7
      %v1735 = vsel %vm1015, %v1732, %v1734
      %v1736 = vrot.slane %v1726, 7
      %v1737 = vsel %vm1015, %v1734, %v1736
      %v1738 = vrot.slane %v1727, 7
      %v1739 = vsel %vm1015, %v1736, %v1738
      %v1740 = vrot.slane %v1728, 7
      %v1741 = vsel %vm1015, %v1738, %v1740
      %v1742 = vrot.slane %v1729, 7
      %v1743 = vsel %vm1015, %v1740, %v1742
      %v1744 = vrot.slane %v1730, 7
      %v1745 = vsel %vm1015, %v1742, %v1744
      %v1746 = vunpack.c.l.b16 %v1731
      %v1747 = vunpack.c.h.b16 %v1731
      %v1748 = vunpack.c.l.b16 0
      %v1749 = vunpack.c.h.b16 0
      %vm1750 = vcmp.ne.s32.totalorder %v1746, %v1748
      %vm1751 = vcmp.ne.s32.totalorder %v1747, %v1749
      %vm1752 = vmpackc.low %vm1751, %vm1750
      %v1753 = vunpack.c.l.b16 %v1733
      %v1754 = vunpack.c.h.b16 %v1733
      %v1755 = vunpack.c.l.b16 0
      %v1756 = vunpack.c.h.b16 0
      %vm1757 = vcmp.ne.s32.totalorder %v1753, %v1755
      %vm1758 = vcmp.ne.s32.totalorder %v1754, %v1756
      %vm1759 = vmpackc.low %vm1758, %vm1757
      %v1760 = vunpack.c.l.b16 %v1735
      %v1761 = vunpack.c.h.b16 %v1735
      %v1762 = vunpack.c.l.b16 0
      %v1763 = vunpack.c.h.b16 0
      %vm1764 = vcmp.ne.s32.totalorder %v1760, %v1762
      %vm1765 = vcmp.ne.s32.totalorder %v1761, %v1763
      %vm1766 = vmpackc.low %vm1765, %vm1764
      %v1767 = vunpack.c.l.b16 %v1737
      %v1768 = vunpack.c.h.b16 %v1737
      %v1769 = vunpack.c.l.b16 0
      %v1770 = vunpack.c.h.b16 0
      %vm1771 = vcmp.ne.s32.totalorder %v1767, %v1769
      %vm1772 = vcmp.ne.s32.totalorder %v1768, %v1770
      %vm1773 = vmpackc.low %vm1772, %vm1771
      %v1774 = vunpack.c.l.b16 %v1739
      %v1775 = vunpack.c.h.b16 %v1739
      %v1776 = vunpack.c.l.b16 0
      %v1777 = vunpack.c.h.b16 0
      %vm1778 = vcmp.ne.s32.totalorder %v1774, %v1776
      %vm1779 = vcmp.ne.s32.totalorder %v1775, %v1777
      %vm1780 = vmpackc.low %vm1779, %vm1778
      %v1781 = vunpack.c.l.b16 %v1741
      %v1782 = vunpack.c.h.b16 %v1741
      %v1783 = vunpack.c.l.b16 0
      %v1784 = vunpack.c.h.b16 0
      %vm1785 = vcmp.ne.s32.totalorder %v1781, %v1783
      %vm1786 = vcmp.ne.s32.totalorder %v1782, %v1784
      %vm1787 = vmpackc.low %vm1786, %vm1785
      %v1788 = vunpack.c.l.b16 %v1743
      %v1789 = vunpack.c.h.b16 %v1743
      %v1790 = vunpack.c.l.b16 0
      %v1791 = vunpack.c.h.b16 0
      %vm1792 = vcmp.ne.s32.totalorder %v1788, %v1790
      %vm1793 = vcmp.ne.s32.totalorder %v1789, %v1791
      %vm1794 = vmpackc.low %vm1793, %vm1792
      %v1795 = vunpack.c.l.b16 %v1745
      %v1796 = vunpack.c.h.b16 %v1745
      %v1797 = vunpack.c.l.b16 0
      %v1798 = vunpack.c.h.b16 0
      %vm1799 = vcmp.ne.s32.totalorder %v1795, %v1797
      %vm1800 = vcmp.ne.s32.totalorder %v1796, %v1798
      %vm1801 = vmpackc.low %vm1800, %vm1799
      %v1802 = vunpack.c.l.b16 %v1744
      %v1803 = vunpack.c.h.b16 %v1744
      %v1804 = vunpack.c.l.b16 0
      %v1805 = vunpack.c.h.b16 0
      %vm1806 = vcmp.ne.s32.totalorder %v1802, %v1804
      %vm1807 = vcmp.ne.s32.totalorder %v1803, %v1805
      %vm1808 = vmpackc.low %vm1807, %vm1806
      %v1809 = vsel %vm1752, %v1017, 0
      %v1810 = vsel %vm1759, %v939, 0
      %v1811 = vsel %vm1766, %v947, 0
      %v1812 = vsel %vm1773, %v955, 0
      %v1813 = vsel %vm1780, %v963, 0
      %v1814 = vsel %vm1787, %v971, 0
      %v1815 = vsel %vm1794, %v979, 0
      %v1816 = vsel %vm1801, %v987, 0
      %v1817 = vsel %vm1808, %v995, 0
      %v1818 = vld [vmem:[%s5 + $0x20] sm:$0xf]
      %v1819 = vld [vmem:[%s5 + $0x24] sm:$0xf]
      %v1820 = vld [vmem:[%s5 + $0x28] sm:$0xf]
      %v1821 = vld [vmem:[%s5 + $0x2c] sm:$0xf]
      %vm1831 = vcmask 1046528
      %v1832 = vrot.slane %v1809, 1
      %v1833 = vrot.slane %v1810, 1
      %v1834 = vsel %vm1831, %v1832, %v1833
      %v1835 = vrot.slane %v1811, 1
      %v1836 = vsel %vm1831, %v1833, %v1835
      %v1837 = vrot.slane %v1812, 1
      %v1838 = vsel %vm1831, %v1835, %v1837
      %v1839 = vrot.slane %v1813, 1
      %v1840 = vsel %vm1831, %v1837, %v1839
      %v1841 = vrot.slane %v1814, 1
      %v1842 = vsel %vm1831, %v1839, %v1841
      %v1843 = vrot.slane %v1815, 1
      %v1844 = vsel %vm1831, %v1841, %v1843
      %v1845 = vrot.slane %v1816, 1
      %v1846 = vsel %vm1831, %v1843, %v1845
      %v1847 = vrot.slane %v1817, 1
      %v1848 = vsel %vm1831, %v1845, %v1847
      %v1853 = vunpack.c.l.b16 %v1818
      %v1854 = vunpack.c.l.b16 %v1819
      %v1855 = vunpack.c.l.b16 %v1820
      %v1856 = vunpack.c.l.b16 %v1821
      %v1857 = vpack.c.b16 %v1854, %v1853
      %v1858 = vpack.c.b16 %v1856, %v1855
      %v1862 = vsel %vm1484, %v1834, 0
      %v1865 = vsel %vm1484, %v1836, 0
      %v1868 = vsel %vm1484, %v1838, 0
      %v1871 = vsel %vm1484, %v1840, 0
      %v1874 = vsel %vm1484, %v1842, 0
      %v1877 = vsel %vm1484, %v1844, 0
      %v1880 = vsel %vm1484, %v1846, 0
      %v1883 = vsel %vm1484, %v1848, 0
      %1885 = vmatpush.bf16.msra.mxu0 0
      %1886 = vmatpush.bf16.msra.mxu0 0
      %1887 = vmatpush.bf16.msra.mxu0 0
      %1888 = vmatpush.bf16.msra.mxu0 0
      %1889 = vmatpush.bf16.msra.mxu0 0
      %1890 = vmatpush.bf16.msra.mxu0 0
      %1891 = vmatpush.bf16.msra.mxu0 %v1858
      %1892 = vmatpush.bf16.msra.mxu0 %v1857
      %1893 = vmatmul.bf16.gmra.mxu0 %v1862
      %v1894 = vpop.f32.mrf.mxu0
      %v1895 = vadd.f32 0.0, %v1894
      %v1896 = vpop.f32.mrf.mxu0
      %v1897 = vadd.f32 0.0, %v1896
      %1898 = vmatmul.bf16.gmra.mxu0 %v1865
      %v1899 = vpop.f32.mrf.mxu0
      %v1900 = vadd.f32 0.0, %v1899
      %v1901 = vpop.f32.mrf.mxu0
      %v1902 = vadd.f32 0.0, %v1901
      %1903 = vmatmul.bf16.gmra.mxu0 %v1868
      %v1904 = vpop.f32.mrf.mxu0
      %v1905 = vadd.f32 0.0, %v1904
      %v1906 = vpop.f32.mrf.mxu0
      %v1907 = vadd.f32 0.0, %v1906
      %1908 = vmatmul.bf16.gmra.mxu0 %v1871
      %v1909 = vpop.f32.mrf.mxu0
      %v1910 = vadd.f32 0.0, %v1909
      %v1911 = vpop.f32.mrf.mxu0
      %v1912 = vadd.f32 0.0, %v1911
      %1913 = vmatmul.bf16.gmra.mxu0 %v1874
      %v1914 = vpop.f32.mrf.mxu0
      %v1915 = vadd.f32 0.0, %v1914
      %v1916 = vpop.f32.mrf.mxu0
      %v1917 = vadd.f32 0.0, %v1916
      %1918 = vmatmul.bf16.gmra.mxu0 %v1877
      %v1919 = vpop.f32.mrf.mxu0
      %v1920 = vadd.f32 0.0, %v1919
      %v1921 = vpop.f32.mrf.mxu0
      %v1922 = vadd.f32 0.0, %v1921
      %1923 = vmatmul.bf16.gmra.mxu0 %v1880
      %v1924 = vpop.f32.mrf.mxu0
      %v1925 = vadd.f32 0.0, %v1924
      %v1926 = vpop.f32.mrf.mxu0
      %v1927 = vadd.f32 0.0, %v1926
      %1928 = vmatmul.bf16.gmra.mxu0 %v1883
      %v1929 = vpop.f32.mrf.mxu0
      %v1930 = vadd.f32 0.0, %v1929
      %v1931 = vpop.f32.mrf.mxu0
      %v1932 = vadd.f32 0.0, %v1931
      %1933 = vdwg.mxu0
      %v1934 = vadd.f32 %v1604, %v1895
      %v1935 = vadd.f32 %v1606, %v1897
      %v1936 = vadd.f32 %v1609, %v1900
      %v1937 = vadd.f32 %v1611, %v1902
      %v1938 = vadd.f32 %v1614, %v1905
      %v1939 = vadd.f32 %v1616, %v1907
      %v1940 = vadd.f32 %v1619, %v1910
      %v1941 = vadd.f32 %v1621, %v1912
      %v1942 = vadd.f32 %v1624, %v1915
      %v1943 = vadd.f32 %v1626, %v1917
      %v1944 = vadd.f32 %v1629, %v1920
      %v1945 = vadd.f32 %v1631, %v1922
      %v1946 = vadd.f32 %v1634, %v1925
      %v1947 = vadd.f32 %v1636, %v1927
      %v1948 = vadd.f32 %v1639, %v1930
      %v1949 = vadd.f32 %v1641, %v1932
      %v1950 = vsel %vm1337, %v939, 0
      %v1951 = vsel %vm1344, %v947, 0
      %v1952 = vsel %vm1351, %v955, 0
      %v1953 = vsel %vm1358, %v963, 0
      %v1954 = vsel %vm1365, %v971, 0
      %v1955 = vsel %vm1372, %v979, 0
      %v1956 = vsel %vm1379, %v987, 0
      %v1957 = vsel %vm1386, %v995, 0
      %v1958 = vld [vmem:[%s5 + $0x30] sm:$0xf]
      %v1959 = vld [vmem:[%s5 + $0x34] sm:$0xf]
      %v1960 = vld [vmem:[%s5 + $0x38] sm:$0xf]
      %v1961 = vld [vmem:[%s5 + $0x3c] sm:$0xf]
      %v1966 = vunpack.c.l.b16 %v1958
      %v1967 = vunpack.c.l.b16 %v1959
      %v1968 = vunpack.c.l.b16 %v1960
      %v1969 = vunpack.c.l.b16 %v1961
      %v1970 = vpack.c.b16 %v1967, %v1966
      %v1971 = vpack.c.b16 %v1969, %v1968
      %v1975 = vsel %vm1484, %v1950, 0
      %v1978 = vsel %vm1484, %v1951, 0
      %v1981 = vsel %vm1484, %v1952, 0
      %v1984 = vsel %vm1484, %v1953, 0
      %v1987 = vsel %vm1484, %v1954, 0
      %v1990 = vsel %vm1484, %v1955, 0
      %v1993 = vsel %vm1484, %v1956, 0
      %v1996 = vsel %vm1484, %v1957, 0
      %1998 = vmatpush.bf16.msra.mxu0 0
      %1999 = vmatpush.bf16.msra.mxu0 0
      %2000 = vmatpush.bf16.msra.mxu0 0
      %2001 = vmatpush.bf16.msra.mxu0 0
      %2002 = vmatpush.bf16.msra.mxu0 0
      %2003 = vmatpush.bf16.msra.mxu0 0
      %2004 = vmatpush.bf16.msra.mxu0 %v1971
      %2005 = vmatpush.bf16.msra.mxu0 %v1970
      %2006 = vmatmul.bf16.gmra.mxu0 %v1975
      %v2007 = vpop.f32.mrf.mxu0
      %v2008 = vadd.f32 0.0, %v2007
      %v2009 = vpop.f32.mrf.mxu0
      %v2010 = vadd.f32 0.0, %v2009
      %2011 = vmatmul.bf16.gmra.mxu0 %v1978
      %v2012 = vpop.f32.mrf.mxu0
      %v2013 = vadd.f32 0.0, %v2012
      %v2014 = vpop.f32.mrf.mxu0
      %v2015 = vadd.f32 0.0, %v2014
      %2016 = vmatmul.bf16.gmra.mxu0 %v1981
      %v2017 = vpop.f32.mrf.mxu0
      %v2018 = vadd.f32 0.0, %v2017
      %v2019 = vpop.f32.mrf.mxu0
      %v2020 = vadd.f32 0.0, %v2019
      %2021 = vmatmul.bf16.gmra.mxu0 %v1984
      %v2022 = vpop.f32.mrf.mxu0
      %v2023 = vadd.f32 0.0, %v2022
      %v2024 = vpop.f32.mrf.mxu0
      %v2025 = vadd.f32 0.0, %v2024
      %2026 = vmatmul.bf16.gmra.mxu0 %v1987
      %v2027 = vpop.f32.mrf.mxu0
      %v2028 = vadd.f32 0.0, %v2027
      %v2029 = vpop.f32.mrf.mxu0
      %v2030 = vadd.f32 0.0, %v2029
      %2031 = vmatmul.bf16.gmra.mxu0 %v1990
      %v2032 = vpop.f32.mrf.mxu0
      %v2033 = vadd.f32 0.0, %v2032
      %v2034 = vpop.f32.mrf.mxu0
      %v2035 = vadd.f32 0.0, %v2034
      %2036 = vmatmul.bf16.gmra.mxu0 %v1993
      %v2037 = vpop.f32.mrf.mxu0
      %v2038 = vadd.f32 0.0, %v2037
      %v2039 = vpop.f32.mrf.mxu0
      %v2040 = vadd.f32 0.0, %v2039
      %2041 = vmatmul.bf16.gmra.mxu0 %v1996
      %v2042 = vpop.f32.mrf.mxu0
      %v2043 = vadd.f32 0.0, %v2042
      %v2044 = vpop.f32.mrf.mxu0
      %v2045 = vadd.f32 0.0, %v2044
      %2046 = vdwg.mxu0
      %v2047 = vadd.f32 %v1934, %v2008
      %v2048 = vadd.f32 %v1935, %v2010
      %v2049 = vadd.f32 %v1936, %v2013
      %v2050 = vadd.f32 %v1937, %v2015
      %v2051 = vadd.f32 %v1938, %v2018
      %v2052 = vadd.f32 %v1939, %v2020
      %v2053 = vadd.f32 %v1940, %v2023
      %v2054 = vadd.f32 %v1941, %v2025
      %v2055 = vadd.f32 %v1942, %v2028
      %v2056 = vadd.f32 %v1943, %v2030
      %v2057 = vadd.f32 %v1944, %v2033
      %v2058 = vadd.f32 %v1945, %v2035
      %v2059 = vadd.f32 %v1946, %v2038
      %v2060 = vadd.f32 %v1947, %v2040
      %v2061 = vadd.f32 %v1948, %v2043
      %v2062 = vadd.f32 %v1949, %v2045
      %v2063 = vld [vmem:[%s5 + $0x40] sm:$0xf]
      %v2064 = vld [vmem:[%s5 + $0x44] sm:$0xf]
      %v2065 = vld [vmem:[%s5 + $0x48] sm:$0xf]
      %v2066 = vld [vmem:[%s5 + $0x4c] sm:$0xf]
      %v2067 = vshrl.u32 %v995, 16
      %v2069 = vor.u32 %v2067, %v1470
      %v2071 = vshll.u32 %v1003, 16
      %v2073 = vrot.slane %v2071, 1
      %v2074 = vsel %vm1403, %v2069, %v2073
      %v2079 = vunpack.c.l.b16 %v2063
      %v2080 = vunpack.c.l.b16 %v2064
      %v2081 = vunpack.c.l.b16 %v2065
      %v2082 = vunpack.c.l.b16 %v2066
      %v2083 = vpack.c.b16 %v2080, %v2079
      %v2084 = vpack.c.b16 %v2082, %v2081
      %v2088 = vsel %vm1484, %v2074, 0
      %2090 = vmatpush.bf16.msra.mxu0 0
      %2091 = vmatpush.bf16.msra.mxu0 0
      %2092 = vmatpush.bf16.msra.mxu0 0
      %2093 = vmatpush.bf16.msra.mxu0 0
      %2094 = vmatpush.bf16.msra.mxu0 0
      %2095 = vmatpush.bf16.msra.mxu0 0
      %2096 = vmatpush.bf16.msra.mxu0 %v2084
      %2097 = vmatpush.bf16.msra.mxu0 %v2083
      %2098 = vmatmul.bf16.gmra.mxu0 %v1489
      %v2099 = vpop.f32.mrf.mxu0
      %v2100 = vadd.f32 0.0, %v2099
      %v2101 = vpop.f32.mrf.mxu0
      %v2102 = vadd.f32 0.0, %v2101
      %2103 = vmatmul.bf16.gmra.mxu0 %v1492
      %v2104 = vpop.f32.mrf.mxu0
      %v2105 = vadd.f32 0.0, %v2104
      %v2106 = vpop.f32.mrf.mxu0
      %v2107 = vadd.f32 0.0, %v2106
      %2108 = vmatmul.bf16.gmra.mxu0 %v1495
      %v2109 = vpop.f32.mrf.mxu0
      %v2110 = vadd.f32 0.0, %v2109
      %v2111 = vpop.f32.mrf.mxu0
      %v2112 = vadd.f32 0.0, %v2111
      %2113 = vmatmul.bf16.gmra.mxu0 %v1498
      %v2114 = vpop.f32.mrf.mxu0
      %v2115 = vadd.f32 0.0, %v2114
      %v2116 = vpop.f32.mrf.mxu0
      %v2117 = vadd.f32 0.0, %v2116
      %2118 = vmatmul.bf16.gmra.mxu0 %v1501
      %v2119 = vpop.f32.mrf.mxu0
      %v2120 = vadd.f32 0.0, %v2119
      %v2121 = vpop.f32.mrf.mxu0
      %v2122 = vadd.f32 0.0, %v2121
      %2123 = vmatmul.bf16.gmra.mxu0 %v1504
      %v2124 = vpop.f32.mrf.mxu0
      %v2125 = vadd.f32 0.0, %v2124
      %v2126 = vpop.f32.mrf.mxu0
      %v2127 = vadd.f32 0.0, %v2126
      %2128 = vmatmul.bf16.gmra.mxu0 %v1507
      %v2129 = vpop.f32.mrf.mxu0
      %v2130 = vadd.f32 0.0, %v2129
      %v2131 = vpop.f32.mrf.mxu0
      %v2132 = vadd.f32 0.0, %v2131
      %2133 = vmatmul.bf16.gmra.mxu0 %v2088
      %v2134 = vpop.f32.mrf.mxu0
      %v2135 = vadd.f32 0.0, %v2134
      %v2136 = vpop.f32.mrf.mxu0
      %v2137 = vadd.f32 0.0, %v2136
      %2138 = vdwg.mxu0
      %v2139 = vadd.f32 %v2047, %v2100
      %v2140 = vadd.f32 %v2048, %v2102
      %v2141 = vadd.f32 %v2049, %v2105
      %v2142 = vadd.f32 %v2050, %v2107
      %v2143 = vadd.f32 %v2051, %v2110
      %v2144 = vadd.f32 %v2052, %v2112
      %v2145 = vadd.f32 %v2053, %v2115
      %v2146 = vadd.f32 %v2054, %v2117
      %v2147 = vadd.f32 %v2055, %v2120
      %v2148 = vadd.f32 %v2056, %v2122
      %v2149 = vadd.f32 %v2057, %v2125
      %v2150 = vadd.f32 %v2058, %v2127
      %v2151 = vadd.f32 %v2059, %v2130
      %v2152 = vadd.f32 %v2060, %v2132
      %v2153 = vadd.f32 %v2061, %v2135
      %v2154 = vadd.f32 %v2062, %v2137
      %v2155 = vsel %vm1752, %v939, 0
      %v2156 = vsel %vm1759, %v947, 0
      %v2157 = vsel %vm1766, %v955, 0
      %v2158 = vsel %vm1773, %v963, 0
      %v2159 = vsel %vm1780, %v971, 0
      %v2160 = vsel %vm1787, %v979, 0
      %v2161 = vsel %vm1794, %v987, 0
      %v2162 = vsel %vm1801, %v995, 0
      %v2163 = vsel %vm1808, %v1003, 0
      %v2164 = vld [vmem:[%s5 + $0x50] sm:$0xf]
      %v2165 = vld [vmem:[%s5 + $0x54] sm:$0xf]
      %v2166 = vld [vmem:[%s5 + $0x58] sm:$0xf]
      %v2167 = vld [vmem:[%s5 + $0x5c] sm:$0xf]
      %v2177 = vrot.slane %v2155, 1
      %v2178 = vrot.slane %v2156, 1
      %v2179 = vsel %vm1831, %v2177, %v2178
      %v2180 = vrot.slane %v2157, 1
      %v2181 = vsel %vm1831, %v2178, %v2180
      %v2182 = vrot.slane %v2158, 1
      %v2183 = vsel %vm1831, %v2180, %v2182
      %v2184 = vrot.slane %v2159, 1
      %v2185 = vsel %vm1831, %v2182, %v2184
      %v2186 = vrot.slane %v2160, 1
      %v2187 = vsel %vm1831, %v2184, %v2186
      %v2188 = vrot.slane %v2161, 1
      %v2189 = vsel %vm1831, %v2186, %v2188
      %v2190 = vrot.slane %v2162, 1
      %v2191 = vsel %vm1831, %v2188, %v2190
      %v2192 = vrot.slane %v2163, 1
      %v2193 = vsel %vm1831, %v2190, %v2192
      %v2198 = vunpack.c.l.b16 %v2164
      %v2199 = vunpack.c.l.b16 %v2165
      %v2200 = vunpack.c.l.b16 %v2166
      %v2201 = vunpack.c.l.b16 %v2167
      %v2202 = vpack.c.b16 %v2199, %v2198
      %v2203 = vpack.c.b16 %v2201, %v2200
      %v2207 = vsel %vm1484, %v2179, 0
      %v2210 = vsel %vm1484, %v2181, 0
      %v2213 = vsel %vm1484, %v2183, 0
      %v2216 = vsel %vm1484, %v2185, 0
      %v2219 = vsel %vm1484, %v2187, 0
      %v2222 = vsel %vm1484, %v2189, 0
      %v2225 = vsel %vm1484, %v2191, 0
      %v2228 = vsel %vm1484, %v2193, 0
      %2230 = vmatpush.bf16.msra.mxu0 0
      %2231 = vmatpush.bf16.msra.mxu0 0
      %2232 = vmatpush.bf16.msra.mxu0 0
      %2233 = vmatpush.bf16.msra.mxu0 0
      %2234 = vmatpush.bf16.msra.mxu0 0
      %2235 = vmatpush.bf16.msra.mxu0 0
      %2236 = vmatpush.bf16.msra.mxu0 %v2203
      %2237 = vmatpush.bf16.msra.mxu0 %v2202
      %2238 = vmatmul.bf16.gmra.mxu0 %v2207
      %v2239 = vpop.f32.mrf.mxu0
      %v2240 = vadd.f32 0.0, %v2239
      %v2241 = vpop.f32.mrf.mxu0
      %v2242 = vadd.f32 0.0, %v2241
      %2243 = vmatmul.bf16.gmra.mxu0 %v2210
      %v2244 = vpop.f32.mrf.mxu0
      %v2245 = vadd.f32 0.0, %v2244
      %v2246 = vpop.f32.mrf.mxu0
      %v2247 = vadd.f32 0.0, %v2246
      %2248 = vmatmul.bf16.gmra.mxu0 %v2213
      %v2249 = vpop.f32.mrf.mxu0
      %v2250 = vadd.f32 0.0, %v2249
      %v2251 = vpop.f32.mrf.mxu0
      %v2252 = vadd.f32 0.0, %v2251
      %2253 = vmatmul.bf16.gmra.mxu0 %v2216
      %v2254 = vpop.f32.mrf.mxu0
      %v2255 = vadd.f32 0.0, %v2254
      %v2256 = vpop.f32.mrf.mxu0
      %v2257 = vadd.f32 0.0, %v2256
      %2258 = vmatmul.bf16.gmra.mxu0 %v2219
      %v2259 = vpop.f32.mrf.mxu0
      %v2260 = vadd.f32 0.0, %v2259
      %v2261 = vpop.f32.mrf.mxu0
      %v2262 = vadd.f32 0.0, %v2261
      %2263 = vmatmul.bf16.gmra.mxu0 %v2222
      %v2264 = vpop.f32.mrf.mxu0
      %v2265 = vadd.f32 0.0, %v2264
      %v2266 = vpop.f32.mrf.mxu0
      %v2267 = vadd.f32 0.0, %v2266
      %2268 = vmatmul.bf16.gmra.mxu0 %v2225
      %v2269 = vpop.f32.mrf.mxu0
      %v2270 = vadd.f32 0.0, %v2269
      %v2271 = vpop.f32.mrf.mxu0
      %v2272 = vadd.f32 0.0, %v2271
      %2273 = vmatmul.bf16.gmra.mxu0 %v2228
      %v2274 = vpop.f32.mrf.mxu0
      %v2275 = vadd.f32 0.0, %v2274
      %v2276 = vpop.f32.mrf.mxu0
      %v2277 = vadd.f32 0.0, %v2276
      %2278 = vdwg.mxu0
      %v2279 = vadd.f32 %v2139, %v2240
      %v2280 = vadd.f32 %v2140, %v2242
      %v2281 = vadd.f32 %v2141, %v2245
      %v2282 = vadd.f32 %v2142, %v2247
      %v2283 = vadd.f32 %v2143, %v2250
      %v2284 = vadd.f32 %v2144, %v2252
      %v2285 = vadd.f32 %v2145, %v2255
      %v2286 = vadd.f32 %v2146, %v2257
      %v2287 = vadd.f32 %v2147, %v2260
      %v2288 = vadd.f32 %v2148, %v2262
      %v2289 = vadd.f32 %v2149, %v2265
      %v2290 = vadd.f32 %v2150, %v2267
      %v2291 = vadd.f32 %v2151, %v2270
      %v2292 = vadd.f32 %v2152, %v2272
      %v2293 = vadd.f32 %v2153, %v2275
      %v2294 = vadd.f32 %v2154, %v2277
      %v2295 = vsel %vm1337, %v947, 0
      %v2296 = vsel %vm1344, %v955, 0
      %v2297 = vsel %vm1351, %v963, 0
      %v2298 = vsel %vm1358, %v971, 0
      %v2299 = vsel %vm1365, %v979, 0
      %v2300 = vsel %vm1372, %v987, 0
      %v2301 = vsel %vm1379, %v995, 0
      %v2302 = vsel %vm1386, %v1003, 0
      %v2303 = vld [vmem:[%s5 + $0x60] sm:$0xf]
      %v2304 = vld [vmem:[%s5 + $0x64] sm:$0xf]
      %v2305 = vld [vmem:[%s5 + $0x68] sm:$0xf]
      %v2306 = vld [vmem:[%s5 + $0x6c] sm:$0xf]
      %v2311 = vunpack.c.l.b16 %v2303
      %v2312 = vunpack.c.l.b16 %v2304
      %v2313 = vunpack.c.l.b16 %v2305
      %v2314 = vunpack.c.l.b16 %v2306
      %v2315 = vpack.c.b16 %v2312, %v2311
      %v2316 = vpack.c.b16 %v2314, %v2313
      %v2320 = vsel %vm1484, %v2295, 0
      %v2323 = vsel %vm1484, %v2296, 0
      %v2326 = vsel %vm1484, %v2297, 0
      %v2329 = vsel %vm1484, %v2298, 0
      %v2332 = vsel %vm1484, %v2299, 0
      %v2335 = vsel %vm1484, %v2300, 0
      %v2338 = vsel %vm1484, %v2301, 0
      %v2341 = vsel %vm1484, %v2302, 0
      %2343 = vmatpush.bf16.msra.mxu0 0
      %2344 = vmatpush.bf16.msra.mxu0 0
      %2345 = vmatpush.bf16.msra.mxu0 0
      %2346 = vmatpush.bf16.msra.mxu0 0
      %2347 = vmatpush.bf16.msra.mxu0 0
      %2348 = vmatpush.bf16.msra.mxu0 0
      %2349 = vmatpush.bf16.msra.mxu0 %v2316
      %2350 = vmatpush.bf16.msra.mxu0 %v2315
      %2351 = vmatmul.bf16.gmra.mxu0 %v2320
      %v2352 = vpop.f32.mrf.mxu0
      %v2353 = vadd.f32 0.0, %v2352
      %v2354 = vpop.f32.mrf.mxu0
      %v2355 = vadd.f32 0.0, %v2354
      %2356 = vmatmul.bf16.gmra.mxu0 %v2323
      %v2357 = vpop.f32.mrf.mxu0
      %v2358 = vadd.f32 0.0, %v2357
      %v2359 = vpop.f32.mrf.mxu0
      %v2360 = vadd.f32 0.0, %v2359
      %2361 = vmatmul.bf16.gmra.mxu0 %v2326
      %v2362 = vpop.f32.mrf.mxu0
      %v2363 = vadd.f32 0.0, %v2362
      %v2364 = vpop.f32.mrf.mxu0
      %v2365 = vadd.f32 0.0, %v2364
      %2366 = vmatmul.bf16.gmra.mxu0 %v2329
      %v2367 = vpop.f32.mrf.mxu0
      %v2368 = vadd.f32 0.0, %v2367
      %v2369 = vpop.f32.mrf.mxu0
      %v2370 = vadd.f32 0.0, %v2369
      %2371 = vmatmul.bf16.gmra.mxu0 %v2332
      %v2372 = vpop.f32.mrf.mxu0
      %v2373 = vadd.f32 0.0, %v2372
      %v2374 = vpop.f32.mrf.mxu0
      %v2375 = vadd.f32 0.0, %v2374
      %2376 = vmatmul.bf16.gmra.mxu0 %v2335
      %v2377 = vpop.f32.mrf.mxu0
      %v2378 = vadd.f32 0.0, %v2377
      %v2379 = vpop.f32.mrf.mxu0
      %v2380 = vadd.f32 0.0, %v2379
      %2381 = vmatmul.bf16.gmra.mxu0 %v2338
      %v2382 = vpop.f32.mrf.mxu0
      %v2383 = vadd.f32 0.0, %v2382
      %v2384 = vpop.f32.mrf.mxu0
      %v2385 = vadd.f32 0.0, %v2384
      %2386 = vmatmul.bf16.gmra.mxu0 %v2341
      %v2387 = vpop.f32.mrf.mxu0
      %v2388 = vadd.f32 0.0, %v2387
      %v2389 = vpop.f32.mrf.mxu0
      %v2390 = vadd.f32 0.0, %v2389
      %2391 = vdwg.mxu0
      %v2392 = vadd.f32 %v2279, %v2353
      %v2393 = vadd.f32 %v2280, %v2355
      %v2394 = vadd.f32 %v2281, %v2358
      %v2395 = vadd.f32 %v2282, %v2360
      %v2396 = vadd.f32 %v2283, %v2363
      %v2397 = vadd.f32 %v2284, %v2365
      %v2398 = vadd.f32 %v2285, %v2368
      %v2399 = vadd.f32 %v2286, %v2370
      %v2400 = vadd.f32 %v2287, %v2373
      %v2401 = vadd.f32 %v2288, %v2375
      %v2402 = vadd.f32 %v2289, %v2378
      %v2403 = vadd.f32 %v2290, %v2380
      %v2404 = vadd.f32 %v2291, %v2383
      %v2405 = vadd.f32 %v2292, %v2385
      %v2406 = vadd.f32 %v2293, %v2388
      %v2407 = vadd.f32 %v2294, %v2390
      %v2408 = vld [vmem:[%s5 + $0x70] sm:$0xf]
      %v2409 = vld [vmem:[%s5 + $0x74] sm:$0xf]
      %v2410 = vld [vmem:[%s5 + $0x78] sm:$0xf]
      %v2411 = vld [vmem:[%s5 + $0x7c] sm:$0xf]
      %v2412 = vshrl.u32 %v1003, 16
      %v2414 = vor.u32 %v2412, %v2073
      %v2416 = vshll.u32 %v1018, 16
      %v2418 = vrot.slane %v2416, 1
      %v2419 = vsel %vm1403, %v2414, %v2418
      %v2424 = vunpack.c.l.b16 %v2408
      %v2425 = vunpack.c.l.b16 %v2409
      %v2426 = vunpack.c.l.b16 %v2410
      %v2427 = vunpack.c.l.b16 %v2411
      %v2428 = vpack.c.b16 %v2425, %v2424
      %v2429 = vpack.c.b16 %v2427, %v2426
      %v2433 = vsel %vm1484, %v2419, 0
      %2435 = vmatpush.bf16.msra.mxu0 0
      %2436 = vmatpush.bf16.msra.mxu0 0
      %2437 = vmatpush.bf16.msra.mxu0 0
      %2438 = vmatpush.bf16.msra.mxu0 0
      %2439 = vmatpush.bf16.msra.mxu0 0
      %2440 = vmatpush.bf16.msra.mxu0 0
      %2441 = vmatpush.bf16.msra.mxu0 %v2429
      %2442 = vmatpush.bf16.msra.mxu0 %v2428
      %2443 = vmatmul.bf16.gmra.mxu0 %v1492
      %v2444 = vpop.f32.mrf.mxu0
      %v2445 = vadd.f32 0.0, %v2444
      %v2446 = vpop.f32.mrf.mxu0
      %v2447 = vadd.f32 0.0, %v2446
      %2448 = vmatmul.bf16.gmra.mxu0 %v1495
      %v2449 = vpop.f32.mrf.mxu0
      %v2450 = vadd.f32 0.0, %v2449
      %v2451 = vpop.f32.mrf.mxu0
      %v2452 = vadd.f32 0.0, %v2451
      %2453 = vmatmul.bf16.gmra.mxu0 %v1498
      %v2454 = vpop.f32.mrf.mxu0
      %v2455 = vadd.f32 0.0, %v2454
      %v2456 = vpop.f32.mrf.mxu0
      %v2457 = vadd.f32 0.0, %v2456
      %2458 = vmatmul.bf16.gmra.mxu0 %v1501
      %v2459 = vpop.f32.mrf.mxu0
      %v2460 = vadd.f32 0.0, %v2459
      %v2461 = vpop.f32.mrf.mxu0
      %v2462 = vadd.f32 0.0, %v2461
      %2463 = vmatmul.bf16.gmra.mxu0 %v1504
      %v2464 = vpop.f32.mrf.mxu0
      %v2465 = vadd.f32 0.0, %v2464
      %v2466 = vpop.f32.mrf.mxu0
      %v2467 = vadd.f32 0.0, %v2466
      %2468 = vmatmul.bf16.gmra.mxu0 %v1507
      %v2469 = vpop.f32.mrf.mxu0
      %v2470 = vadd.f32 0.0, %v2469
      %v2471 = vpop.f32.mrf.mxu0
      %v2472 = vadd.f32 0.0, %v2471
      %2473 = vmatmul.bf16.gmra.mxu0 %v2088
      %v2474 = vpop.f32.mrf.mxu0
      %v2475 = vadd.f32 0.0, %v2474
      %v2476 = vpop.f32.mrf.mxu0
      %v2477 = vadd.f32 0.0, %v2476
      %2478 = vmatmul.bf16.gmra.mxu0 %v2433
      %v2479 = vpop.f32.mrf.mxu0
      %v2480 = vadd.f32 0.0, %v2479
      %v2481 = vpop.f32.mrf.mxu0
      %v2482 = vadd.f32 0.0, %v2481
      %2483 = vdwg.mxu0
      %v2484 = vadd.f32 %v2392, %v2445
      %v2485 = vadd.f32 %v2393, %v2447
      %v2486 = vadd.f32 %v2394, %v2450
      %v2487 = vadd.f32 %v2395, %v2452
      %v2488 = vadd.f32 %v2396, %v2455
      %v2489 = vadd.f32 %v2397, %v2457
      %v2490 = vadd.f32 %v2398, %v2460
      %v2491 = vadd.f32 %v2399, %v2462
      %v2492 = vadd.f32 %v2400, %v2465
      %v2493 = vadd.f32 %v2401, %v2467
      %v2494 = vadd.f32 %v2402, %v2470
      %v2495 = vadd.f32 %v2403, %v2472
      %v2496 = vadd.f32 %v2404, %v2475
      %v2497 = vadd.f32 %v2405, %v2477
      %v2498 = vadd.f32 %v2406, %v2480
      %v2499 = vadd.f32 %v2407, %v2482
      %v2500 = vsel %vm1752, %v947, 0
      %v2501 = vsel %vm1759, %v955, 0
      %v2502 = vsel %vm1766, %v963, 0
      %v2503 = vsel %vm1773, %v971, 0
      %v2504 = vsel %vm1780, %v979, 0
      %v2505 = vsel %vm1787, %v987, 0
      %v2506 = vsel %vm1794, %v995, 0
      %v2507 = vsel %vm1801, %v1003, 0
      %v2508 = vsel %vm1808, %v1018, 0
      %v2509 = vld [vmem:[%s5 + $0x80] sm:$0xf]
      %v2510 = vld [vmem:[%s5 + $0x84] sm:$0xf]
      %v2511 = vld [vmem:[%s5 + $0x88] sm:$0xf]
      %v2512 = vld [vmem:[%s5 + $0x8c] sm:$0xf]
      %v2522 = vrot.slane %v2500, 1
      %v2523 = vrot.slane %v2501, 1
      %v2524 = vsel %vm1831, %v2522, %v2523
      %v2525 = vrot.slane %v2502, 1
      %v2526 = vsel %vm1831, %v2523, %v2525
      %v2527 = vrot.slane %v2503, 1
      %v2528 = vsel %vm1831, %v2525, %v2527
      %v2529 = vrot.slane %v2504, 1
      %v2530 = vsel %vm1831, %v2527, %v2529
      %v2531 = vrot.slane %v2505, 1
      %v2532 = vsel %vm1831, %v2529, %v2531
      %v2533 = vrot.slane %v2506, 1
      %v2534 = vsel %vm1831, %v2531, %v2533
      %v2535 = vrot.slane %v2507, 1
      %v2536 = vsel %vm1831, %v2533, %v2535
      %v2537 = vrot.slane %v2508, 1
      %v2538 = vsel %vm1831, %v2535, %v2537
      %v2543 = vunpack.c.l.b16 %v2509
      %v2544 = vunpack.c.l.b16 %v2510
      %v2545 = vunpack.c.l.b16 %v2511
      %v2546 = vunpack.c.l.b16 %v2512
      %v2547 = vpack.c.b16 %v2544, %v2543
      %v2548 = vpack.c.b16 %v2546, %v2545
      %v2552 = vsel %vm1484, %v2524, 0
      %v2555 = vsel %vm1484, %v2526, 0
      %v2558 = vsel %vm1484, %v2528, 0
      %v2561 = vsel %vm1484, %v2530, 0
      %v2564 = vsel %vm1484, %v2532, 0
      %v2567 = vsel %vm1484, %v2534, 0
      %v2570 = vsel %vm1484, %v2536, 0
      %v2573 = vsel %vm1484, %v2538, 0
      %2575 = vmatpush.bf16.msra.mxu0 0
      %2576 = vmatpush.bf16.msra.mxu0 0
      %2577 = vmatpush.bf16.msra.mxu0 0
      %2578 = vmatpush.bf16.msra.mxu0 0
      %2579 = vmatpush.bf16.msra.mxu0 0
      %2580 = vmatpush.bf16.msra.mxu0 0
      %2581 = vmatpush.bf16.msra.mxu0 %v2548
      %2582 = vmatpush.bf16.msra.mxu0 %v2547
      %2583 = vmatmul.bf16.gmra.mxu0 %v2552
      %v2584 = vpop.f32.mrf.mxu0
      %v2585 = vadd.f32 0.0, %v2584
      %v2586 = vpop.f32.mrf.mxu0
      %v2587 = vadd.f32 0.0, %v2586
      %2588 = vmatmul.bf16.gmra.mxu0 %v2555
      %v2589 = vpop.f32.mrf.mxu0
      %v2590 = vadd.f32 0.0, %v2589
      %v2591 = vpop.f32.mrf.mxu0
      %v2592 = vadd.f32 0.0, %v2591
      %2593 = vmatmul.bf16.gmra.mxu0 %v2558
      %v2594 = vpop.f32.mrf.mxu0
      %v2595 = vadd.f32 0.0, %v2594
      %v2596 = vpop.f32.mrf.mxu0
      %v2597 = vadd.f32 0.0, %v2596
      %2598 = vmatmul.bf16.gmra.mxu0 %v2561
      %v2599 = vpop.f32.mrf.mxu0
      %v2600 = vadd.f32 0.0, %v2599
      %v2601 = vpop.f32.mrf.mxu0
      %v2602 = vadd.f32 0.0, %v2601
      %2603 = vmatmul.bf16.gmra.mxu0 %v2564
      %v2604 = vpop.f32.mrf.mxu0
      %v2605 = vadd.f32 0.0, %v2604
      %v2606 = vpop.f32.mrf.mxu0
      %v2607 = vadd.f32 0.0, %v2606
      %2608 = vmatmul.bf16.gmra.mxu0 %v2567
      %v2609 = vpop.f32.mrf.mxu0
      %v2610 = vadd.f32 0.0, %v2609
      %v2611 = vpop.f32.mrf.mxu0
      %v2612 = vadd.f32 0.0, %v2611
      %2613 = vmatmul.bf16.gmra.mxu0 %v2570
      %v2614 = vpop.f32.mrf.mxu0
      %v2615 = vadd.f32 0.0, %v2614
      %v2616 = vpop.f32.mrf.mxu0
      %v2617 = vadd.f32 0.0, %v2616
      %2618 = vmatmul.bf16.gmra.mxu0 %v2573
      %v2619 = vpop.f32.mrf.mxu0
      %v2620 = vadd.f32 0.0, %v2619
      %v2621 = vpop.f32.mrf.mxu0
      %v2622 = vadd.f32 0.0, %v2621
      %2623 = vdwg.mxu0
      %v2624 = vadd.f32 %v2484, %v2585
      %v2625 = vadd.f32 %v2485, %v2587
      %v2626 = vadd.f32 %v2486, %v2590
      %v2627 = vadd.f32 %v2487, %v2592
      %v2628 = vadd.f32 %v2488, %v2595
      %v2629 = vadd.f32 %v2489, %v2597
      %v2630 = vadd.f32 %v2490, %v2600
      %v2631 = vadd.f32 %v2491, %v2602
      %v2632 = vadd.f32 %v2492, %v2605
      %v2633 = vadd.f32 %v2493, %v2607
      %v2634 = vadd.f32 %v2494, %v2610
      %v2635 = vadd.f32 %v2495, %v2612
      %v2636 = vadd.f32 %v2496, %v2615
      %v2637 = vadd.f32 %v2497, %v2617
      %v2638 = vadd.f32 %v2498, %v2620
      %v2639 = vadd.f32 %v2499, %v2622
      %v2640 = vld [vmem:[%s6] sm:$0x1]
      %v2642 = vperm.slane %v2640, 0
      %v2644 = vadd.f32 %v2624, %v2642
      %v2645 = vadd.f32 %v2625, %v2642
      %v2646 = vadd.f32 %v2626, %v2642
      %v2647 = vadd.f32 %v2627, %v2642
      %v2648 = vadd.f32 %v2628, %v2642
      %v2649 = vadd.f32 %v2629, %v2642
      %v2650 = vadd.f32 %v2630, %v2642
      %v2651 = vadd.f32 %v2631, %v2642
      %v2652 = vadd.f32 %v2632, %v2642
      %v2653 = vadd.f32 %v2633, %v2642
      %v2654 = vadd.f32 %v2634, %v2642
      %v2655 = vadd.f32 %v2635, %v2642
      %v2656 = vadd.f32 %v2636, %v2642
      %v2657 = vadd.f32 %v2637, %v2642
      %v2658 = vadd.f32 %v2638, %v2642
      %v2659 = vadd.f32 %v2639, %v2642
      %vm2660 = vcmp.gt.f32.partialorder %v2644, 0.0
      %vm2661 = vcmp.gt.f32.partialorder %v2645, 0.0
      %vm2662 = vcmp.gt.f32.partialorder %v2646, 0.0
      %vm2663 = vcmp.gt.f32.partialorder %v2647, 0.0
      %vm2664 = vcmp.gt.f32.partialorder %v2648, 0.0
      %vm2665 = vcmp.gt.f32.partialorder %v2649, 0.0
      %vm2666 = vcmp.gt.f32.partialorder %v2650, 0.0
      %vm2667 = vcmp.gt.f32.partialorder %v2651, 0.0
      %vm2668 = vcmp.gt.f32.partialorder %v2652, 0.0
      %vm2669 = vcmp.gt.f32.partialorder %v2653, 0.0
      %vm2670 = vcmp.gt.f32.partialorder %v2654, 0.0
      %vm2671 = vcmp.gt.f32.partialorder %v2655, 0.0
      %vm2672 = vcmp.gt.f32.partialorder %v2656, 0.0
      %vm2673 = vcmp.gt.f32.partialorder %v2657, 0.0
      %vm2674 = vcmp.gt.f32.partialorder %v2658, 0.0
      %vm2675 = vcmp.gt.f32.partialorder %v2659, 0.0
      %v2676 = vmul.f32 %v2644, 0.1
      %v2677 = vmul.f32 %v2645, 0.1
      %v2678 = vmul.f32 %v2646, 0.1
      %v2679 = vmul.f32 %v2647, 0.1
      %v2680 = vmul.f32 %v2648, 0.1
      %v2681 = vmul.f32 %v2649, 0.1
      %v2682 = vmul.f32 %v2650, 0.1
      %v2683 = vmul.f32 %v2651, 0.1
      %v2684 = vmul.f32 %v2652, 0.1
      %v2685 = vmul.f32 %v2653, 0.1
      %v2686 = vmul.f32 %v2654, 0.1
      %v2687 = vmul.f32 %v2655, 0.1
      %v2688 = vmul.f32 %v2656, 0.1
      %v2689 = vmul.f32 %v2657, 0.1
      %v2690 = vmul.f32 %v2658, 0.1
      %v2691 = vmul.f32 %v2659, 0.1
      %v2692 = vsel %vm2660, %v2644, %v2676
      %v2693 = vsel %vm2661, %v2645, %v2677
      %v2694 = vsel %vm2662, %v2646, %v2678
      %v2695 = vsel %vm2663, %v2647, %v2679
      %v2696 = vsel %vm2664, %v2648, %v2680
      %v2697 = vsel %vm2665, %v2649, %v2681
      %v2698 = vsel %vm2666, %v2650, %v2682
      %v2699 = vsel %vm2667, %v2651, %v2683
      %v2700 = vsel %vm2668, %v2652, %v2684
      %v2701 = vsel %vm2669, %v2653, %v2685
      %v2702 = vsel %vm2670, %v2654, %v2686
      %v2703 = vsel %vm2671, %v2655, %v2687
      %v2704 = vsel %vm2672, %v2656, %v2688
      %v2705 = vsel %vm2673, %v2657, %v2689
      %v2706 = vsel %vm2674, %v2658, %v2690
      %v2707 = vsel %vm2675, %v2659, %v2691
      %v2708 = vadd.f32 %v2692, %v393
      %v2709 = vadd.f32 %v2693, %v394
      %v2710 = vadd.f32 %v2694, %v395
      %v2711 = vadd.f32 %v2695, %v396
      %v2712 = vadd.f32 %v2696, %v397
      %v2713 = vadd.f32 %v2697, %v398
      %v2714 = vadd.f32 %v2698, %v399
      %v2715 = vadd.f32 %v2699, %v400
      %v2716 = vadd.f32 %v2700, %v401
      %v2717 = vadd.f32 %v2701, %v402
      %v2718 = vadd.f32 %v2702, %v403
      %v2719 = vadd.f32 %v2703, %v404
      %v2720 = vadd.f32 %v2704, %v405
      %v2721 = vadd.f32 %v2705, %v406
      %v2722 = vadd.f32 %v2706, %v407
      %v2723 = vadd.f32 %v2707, %v408
      %2724 = vst.msk [vmem:[%s384] sm:$0xff] %vm515, %v2708
      %2725 = vst.msk [vmem:[%s384 + $0x8] sm:$0xff] %vm515, %v2709
      %2726 = vst.msk [vmem:[%s384 + $0x10] sm:$0xff] %vm515, %v2710
      %2727 = vst.msk [vmem:[%s384 + $0x18] sm:$0xff] %vm515, %v2711
      %2728 = vst.msk [vmem:[%s384 + $0x20] sm:$0xff] %vm515, %v2712
      %2729 = vst.msk [vmem:[%s384 + $0x28] sm:$0xff] %vm515, %v2713
      %2730 = vst.msk [vmem:[%s384 + $0x30] sm:$0xff] %vm515, %v2714
      %2731 = vst.msk [vmem:[%s384 + $0x38] sm:$0xff] %vm515, %v2715
      %2732 = vst.msk [vmem:[%s384 + $0x40] sm:$0xff] %vm515, %v2716
      %2733 = vst.msk [vmem:[%s384 + $0x48] sm:$0xff] %vm515, %v2717
      %2734 = vst.msk [vmem:[%s384 + $0x50] sm:$0xff] %vm515, %v2718
      %2735 = vst.msk [vmem:[%s384 + $0x58] sm:$0xff] %vm515, %v2719
      %2736 = vst.msk [vmem:[%s384 + $0x60] sm:$0xff] %vm515, %v2720
      %2737 = vst.msk [vmem:[%s384 + $0x68] sm:$0xff] %vm515, %v2721
      %2738 = vst.msk [vmem:[%s384 + $0x70] sm:$0xff] %vm515, %v2722
      %2739 = vst.msk [vmem:[%s384 + $0x78] sm:$0xff] %vm515, %v2723
      %s2740 = smul.u32 16, %s23
      %p2741 = scmp.lt.s32.totalorder %s22, 1
      %s2742 = scalar_select %p2741, %s22, 1
      %p2743 = scmp.lt.s32.totalorder %s2740, 31
      %s2744 = scalar_select %p2743, %s2740, 31
      %s2745 = smul.addr %s2742, 32
      %s2746 = sadd.s32 %s2744, %s2745
      %s2747 = smul.addr %s2746, 8
      %s2748 = scalar_lea.vmem %s7, %s2747
      // Predicated region
      $region49: #{tpu_custom_call.1} parent=47 // pred_check
        %p2749 = pneg %p218
      $region50: #{tpu_custom_call.1} parent=47 // pred_check_branch
        %2751 = sbr.rel (%p2749) target = $region52
      $region51: #{tpu_custom_call.1} parent=47 // pred_region
        %s2752 = smul.u32 16, %s23
      $region52: #{tpu_custom_call.1} parent=47 // pred_fallthru
        _
    $region48: #{tpu_custom_call.1} parent=5 // pred_fallthru
      _
    %p2753 = scmp.le.s32.totalorder 2, %s13
    // Predicated region
    $region53: #{tpu_custom_call.1} parent=5 // pred_check
      %p2754 = pneg %p2753
    $region54: #{tpu_custom_call.1} parent=5 // pred_check_branch
      %2756 = sbr.rel (%p2754) target = $region56
    $region55: #{tpu_custom_call.1} parent=5 // pred_region
      %s2757 = ssub.s32 %s13, 2
      // Predicated region
      $region57: #{tpu_custom_call.1} parent=55 // pred_check
        %p2758 = pneg %p224
      $region58: #{tpu_custom_call.1} parent=55 // pred_check_branch
        %2760 = sbr.rel (%p2758) target = $region60
      $region59: #{tpu_custom_call.1} parent=55 // pred_region
        %s2761 = smul.u32 16, %s25
        %p2762 = scmp.lt.s32.totalorder %s24, 1
        %s2763 = scalar_select %p2762, %s24, 1
        %p2764 = scmp.lt.s32.totalorder %s2761, 31
        %s2765 = scalar_select %p2764, %s2761, 31
        %s2766 = smul.addr %s2763, 32
        %s2767 = sadd.s32 %s2765, %s2766
        %s2768 = smul.addr %s2767, 8
        %s2769 = scalar_lea.vmem %s7, %s2768
      $region60: #{tpu_custom_call.1} parent=55 // pred_fallthru
        _
    $region56: #{tpu_custom_call.1} parent=5 // pred_fallthru
      _
  $region6: #{tpu_custom_call.1} parent=0 // loop_footer
    %s17 = sadd.s32 1, %s13
  $region7: #{tpu_custom_call.1} parent=0 // loop_footer_branch
    %12 = sbr.rel target = $region3
  $region8: #{tpu_custom_call.1} parent=0 // loop_exit
    _

</llo_original>
